<compile_context>
chip_gen: v7x
topology: tpu7x:2x2x1
jax: 0.10.0
libtpu: 0.0.40
codegen_flags: <defaults>
</compile_context>

<pallas_src>
import functools
import math

import jax
import jax.numpy as jnp
from jax import lax
from jax.experimental import pallas as pl
from jax.experimental.pallas import tpu as pltpu

LEAKY_ALPHA = 0.2   # GAT LeakyReLU negative slope
NEG_BIG = -9e15     # masking constant used by the PyTorch GraphAttentionLayer


# ----------------------------------------------------------------------------
# Kernel 1: fused projection  x @ [W | R | W@a1]  and the transposed f2 row.
# ----------------------------------------------------------------------------
def proj_kernel(x_ref, wrf_ref, w2t_ref, wh_ref, res_ref, f1_ref, f2t_ref, *, cp):
    x = x_ref[...]                                                   # (tr, F) f32
    prj = jnp.dot(x, wrf_ref[...], preferred_element_type=jnp.float32)  # (tr, 3*Cp)
    wh_ref[...] = prj[:, :cp].astype(jnp.bfloat16)                   # Wh  (bf16 in HBM)
    res_ref[...] = prj[:, cp:2 * cp]                                 # x @ R (f32)
    f1_ref[...] = prj[:, 2 * cp:2 * cp + 1]                          # Wh @ a1 (tr, 1)
    # f2 row: (8, F) . (tr, F)^T -> (8, tr); keep sublane 0.  Producing f2 directly in
    # the transposed layout avoids any lane<->sublane transpose in the attention kernel.
    f2 = lax.dot_general(w2t_ref[...], x, (((1,), (1,)), ((), ())),
                         preferred_element_type=jnp.float32)         # (8, tr)
    f2t_ref[...] = f2[0:1, :]                                        # (1, tr)


# ----------------------------------------------------------------------------
# Kernel 2: flash-style masked attention + ELU + residual + log_softmax.
# ----------------------------------------------------------------------------
def attn_kernel(f1_ref, f2t_ref, adj_ref, wh_ref, res_ref, out_ref,
                m_sc, l_sc, acc_sc, *, nclass, tk, leaky_alpha):
    ki = pl.program_id(1)

    @pl.when(ki == 0)
    def _init():
        m_sc[...] = jnp.full(m_sc.shape, -jnp.inf, dtype=jnp.float32)
        l_sc[...] = jnp.zeros(l_sc.shape, dtype=jnp.float32)
        acc_sc[...] = jnp.zeros(acc_sc.shape, dtype=jnp.float32)

    # attention logits for this (row-tile, kv-tile):  e[i,j] = LeakyReLU(f1[i] + f2[j])
    e = f1_ref[...] + f2t_ref[...]                                   # (tq, tk) f32
    e = jnp.where(e > 0, e, leaky_alpha * e)
    s = jnp.where(adj_ref[...] > 0, e, jnp.float32(NEG_BIG))         # int8 mask compare

    # online softmax update
    m_prev = m_sc[...]
    m_new = jnp.maximum(m_prev, jnp.max(s, axis=1, keepdims=True))
    alpha = jnp.exp(m_prev - m_new)
    p = jnp.exp(s - m_new)                                           # (tq, tk) f32
    l_sc[...] = alpha * l_sc[...] + jnp.sum(p, axis=1, keepdims=True)

    off = pl.multiple_of(ki * tk, tk)
    wh_k = wh_ref[pl.ds(off, tk), :]                                 # (tk, Cp) bf16
    acc_sc[...] = alpha * acc_sc[...] + jnp.dot(
        p.astype(jnp.bfloat16), wh_k, preferred_element_type=jnp.float32)
    m_sc[...] = m_new

    @pl.when(ki == pl.num_programs(1) - 1)
    def _finalize():
        h = acc_sc[...] * pl.reciprocal(l_sc[...], approx=True)      # att @ Wh
        # ELU(alpha=1). exp(min(h,0))-1 avoids evaluating exp on large positives and
        # matches expm1 to within f32 rounding for the |h|~O(1) values seen here.
        h = jnp.where(h > 0, h, jnp.exp(jnp.minimum(h, 0.0)) - 1.0)
        y = h + res_ref[...]                                         # raw residual
        # masked log_softmax over the first `nclass` (real) lanes of the padded Cp dim
        col = lax.broadcasted_iota(jnp.int32, y.shape, 1)
        y_m = jnp.where(col < nclass, y, -jnp.inf)
        mrow = jnp.max(y_m, axis=1, keepdims=True)
        lse = jnp.log(jnp.sum(jnp.exp(y_m - mrow), axis=1, keepdims=True))
        out_ref[...] = (y - mrow) - lse


# ----------------------------------------------------------------------------
# Wrapper: padding, weight prep, and the two pallas_calls.
# ----------------------------------------------------------------------------
def method_deep_gat_resnet_forward(x, adj, W, a1, a2, R,
                                   *, leaky_alpha=LEAKY_ALPHA, tq=256, tk=256):
    """x:(N,F) f32, adj:(N,N) (any numeric, >0 means edge), W,R:(F,C), a1,a2:(C,)."""
    assert tq % 32 == 0 and tk % 128 == 0, "tile sizes must respect (int8) tiling"
    f32 = jnp.float32
    N, F = x.shape
    C = W.shape[1]
    Cp = ((C + 127) // 128) * 128                      # lane-dense class dim
    step = tq * tk // math.gcd(tq, tk)                 # lcm(tq, tk)
    Np = ((N + step - 1) // step) * step               # pad node count to tile multiple

    # -- padded inputs (padded rows/cols have zero features / no edges; they are
    #    computed but sliced away; zero-adj rows only occur for padding since real
    #    rows carry self-loops, matching the PyTorch reference behaviour).
    xp = jnp.zeros((Np, F), f32).at[:N, :].set(x.astype(f32))
    adjp = jnp.zeros((Np, Np), jnp.int8).at[:N, :N].set((adj > 0).astype(jnp.int8))

    # -- tiny weight preprocessing in plain JAX (pad to lane-dense Cp, fuse matmuls)
    Wp = jnp.zeros((F, Cp), f32).at[:, :C].set(W.astype(f32))
    Rp = jnp.zeros((F, Cp), f32).at[:, :C].set(R.astype(f32))
    w1 = W.astype(f32) @ a1.reshape(C, 1).astype(f32)            # (F, 1) -> f1 = x @ w1
    w2 = W.astype(f32) @ a2.reshape(C, 1).astype(f32)            # (F, 1) -> f2 = x @ w2
    w1p = jnp.zeros((F, Cp), f32).at[:, :1].set(w1)
    wrf = jnp.concatenate([Wp, Rp, w1p], axis=1)                 # (F, 3*Cp)
    w2t8 = jnp.broadcast_to(w2.reshape(1, F), (8, F)).astype(f32)

    # ---------------- kernel 1: projection ----------------
    nr = Np // tq
    wh, res, f1, f2t = pl.pallas_call(
        functools.partial(proj_kernel, cp=Cp),
        out_shape=(jax.ShapeDtypeStruct((Np, Cp), jnp.bfloat16),
                   jax.ShapeDtypeStruct((Np, Cp), f32),
                   jax.ShapeDtypeStruct((Np, 1), f32),
                   jax.ShapeDtypeStruct((1, Np), f32)),
        grid=(nr,),
        in_specs=[pl.BlockSpec((tq, F), lambda i: (i, 0)),
                  pl.BlockSpec((F, 3 * Cp), lambda i: (0, 0)),
                  pl.BlockSpec((8, F), lambda i: (0, 0))],
        out_specs=(pl.BlockSpec((tq, Cp), lambda i: (i, 0)),
                   pl.BlockSpec((tq, Cp), lambda i: (i, 0)),
                   pl.BlockSpec((tq, 1), lambda i: (i, 0)),
                   pl.BlockSpec((1, tq), lambda i: (0, i))),
        compiler_params=pltpu.CompilerParams(dimension_semantics=("parallel",)),
    )(xp, wrf, w2t8)

    # ---------------- kernel 2: flash-style GAT attention ----------------
    nq, nk = Np // tq, Np // tk
    out_padded = pl.pallas_call(
        functools.partial(attn_kernel, nclass=C, tk=tk, leaky_alpha=leaky_alpha),
        out_shape=jax.ShapeDtypeStruct((Np, Cp), f32),
        grid=(nq, nk),
        in_specs=[pl.BlockSpec((tq, 1), lambda qi, ki: (qi, 0)),     # f1 (resident per q)
                  pl.BlockSpec((1, tk), lambda qi, ki: (0, ki)),     # f2^T (per kv tile)
                  pl.BlockSpec((tq, tk), lambda qi, ki: (qi, ki)),   # adj int8
                  pl.BlockSpec((Np, Cp), lambda qi, ki: (0, 0)),     # Wh (bf16, resident)
                  pl.BlockSpec((tq, Cp), lambda qi, ki: (qi, 0))],   # residual (resident)
        out_specs=pl.BlockSpec((tq, Cp), lambda qi, ki: (qi, 0)),
        scratch_shapes=[pltpu.VMEM((tq, 1), f32),    # m
                        pltpu.VMEM((tq, 1), f32),    # l
                        pltpu.VMEM((tq, Cp), f32)],  # acc
        compiler_params=pltpu.CompilerParams(
            dimension_semantics=("parallel", "arbitrary")),
    )(f1, f2t, adjp, wh, res)

    return out_padded[:N, :C]


# ----------------------------------------------------------------------------
# Pure-JAX f32 reference mirroring the PyTorch forward_raw (depth=1, eval mode).
# ----------------------------------------------------------------------------
def reference_forward(x, adj, W, a1, a2, R, leaky_alpha=LEAKY_ALPHA):
    Wh = x @ W
    f1 = Wh @ a1.reshape(-1, 1)
    f2 = Wh @ a2.reshape(-1, 1)
    e = f1 + f2.T
    e = jnp.where(e > 0, e, leaky_alpha * e)
    logits = jnp.where(adj > 0, e, NEG_BIG)
    att = jax.nn.softmax(logits, axis=1)
    h = att @ Wh
    y = jax.nn.elu(h) + x @ R
    return jax.nn.log_softmax(y, axis=1)


if __name__ == "__main__":
    # Small graph consistent with the module: N nodes, nfeat features, nclass outputs.
    # N deliberately not tile-aligned (exercises padding) and > tk (exercises the
    # multi-step online-softmax path: with tq=tk=256, Np=768, grid = (3, 3)).
    N, NFEAT, NCLASS = 520, 96, 7
    key = jax.random.PRNGKey(0)
    k_x, k_adj, k_w, k_a, k_r = jax.random.split(key, 5)

    x = jax.random.normal(k_x, (N, NFEAT), dtype=jnp.float32)

    # sparse-ish random adjacency with self-loops (values in {0,1})
    adj = (jax.random.uniform(k_adj, (N, N)) > 0.97).astype(jnp.float32)
    adj = jnp.maximum(adj, jnp.eye(N, dtype=jnp.float32))

    # GraphAttentionLayer params (xavier-uniform style, deterministic)
    limit_w = math.sqrt(6.0 / (NFEAT + NCLASS)) * 1.414
    W = jax.random.uniform(k_w, (NFEAT, NCLASS), minval=-limit_w, maxval=limit_w,
                           dtype=jnp.float32)
    limit_a = math.sqrt(6.0 / (2 * NCLASS + 1)) * 1.414
    a_full = jax.random.uniform(k_a, (2 * NCLASS,), minval=-limit_a, maxval=limit_a,
                                dtype=jnp.float32)
    a1 = a_full[:NCLASS]
    a2 = a_full[NCLASS:]

    # residual_weight_list[0]: uniform(-stdv, stdv), stdv = 1/sqrt(nclass)
    stdv = 1.0 / math.sqrt(NCLASS)
    R = jax.random.uniform(k_r, (NFEAT, NCLASS), minval=-stdv, maxval=stdv,
                           dtype=jnp.float32)

    # TODO(synk): F.dropout is a no-op here (eval mode, training=False) and is omitted.

    out = method_deep_gat_resnet_forward(x, adj, W, a1, a2, R)
    out = jax.block_until_ready(out)

    ref = reference_forward(x, adj, W, a1, a2, R)
    # Tolerance covers the deliberate bf16 MXU operands used for the O(N^2) att@Wh
    # matmul (f32 accumulation); the softmax-exponent path is exact f32.
    max_err = float(jnp.max(jnp.abs(out - ref)))
    assert max_err < 5e-2, f"mismatch vs reference: max abs err {max_err}"

    print("KERNEL_OK")
</pallas_src>

<mosaic_0001>
module attributes {stable_mosaic.version = 11 : i64} {
  func.func @proj_kernel(%arg0: i32, %arg1: memref<256x96xf32, #tpu.memory_space<vmem>>, %arg2: memref<96x384xf32, #tpu.memory_space<vmem>>, %arg3: memref<8x96xf32, #tpu.memory_space<vmem>>, %arg4: memref<256x128xbf16, #tpu.memory_space<vmem>>, %arg5: memref<256x128xf32, #tpu.memory_space<vmem>>, %arg6: memref<256x1xf32, #tpu.memory_space<vmem>>, %arg7: memref<1x256xf32, #tpu.memory_space<vmem>>) attributes {dimension_semantics = [#tpu.dimension_semantics<parallel>], iteration_bounds = array<i64: 3>, scalar_prefetch = 0 : i64, scratch_operands = 0 : i64, tpu.core_type = #tpu.core_type<tc>, window_params = [{transform_indices = @transform_0, window_bounds = array<i64: 256, 96>}, {pipeline_mode = #tpu.pipeline_mode<synchronous>, transform_indices = @transform_1, window_bounds = array<i64: 96, 384>}, {pipeline_mode = #tpu.pipeline_mode<synchronous>, transform_indices = @transform_2, window_bounds = array<i64: 8, 96>}, {transform_indices = @transform_3, window_bounds = array<i64: 256, 128>}, {transform_indices = @transform_4, window_bounds = array<i64: 256, 128>}, {transform_indices = @transform_5, window_bounds = array<i64: 256, 1>}, {transform_indices = @transform_6, window_bounds = array<i64: 1, 256>}]} {
    %c0 = arith.constant 0 : index
    %c0_0 = arith.constant 0 : index
    %0 = vector.load %arg1[%c0, %c0_0] : memref<256x96xf32, #tpu.memory_space<vmem>>, vector<256x96xf32>
    %c0_1 = arith.constant 0 : index
    %c0_2 = arith.constant 0 : index
    %1 = vector.load %arg2[%c0_1, %c0_2] : memref<96x384xf32, #tpu.memory_space<vmem>>, vector<96x384xf32>
    %cst = arith.constant dense<0.000000e+00> : vector<256x384xf32>
    %2 = tpu.matmul %0, %1, %cst {dimension_numbers = #tpu.dot_dimension_numbers<[1], [0], [0], [1], [0, 0, 1, 1], [], []>} : vector<256x96xf32>, vector<96x384xf32>, vector<256x384xf32> -> vector<256x384xf32>
    %3 = vector.extract_strided_slice %2 {offsets = [0, 0], sizes = [256, 128], strides = [1, 1]} : vector<256x384xf32> to vector<256x128xf32>
    %4 = arith.truncf %3 : vector<256x128xf32> to vector<256x128xbf16>
    %c0_3 = arith.constant 0 : index
    %c0_4 = arith.constant 0 : index
    %5 = vector.load %arg4[%c0_3, %c0_4] : memref<256x128xbf16, #tpu.memory_space<vmem>>, vector<256x128xbf16>
    tpu.vector_store %arg4[%c0_3, %c0_4], %4 {strides = array<i32>} : memref<256x128xbf16, #tpu.memory_space<vmem>>, vector<256x128xbf16>,
    %6 = vector.extract_strided_slice %2 {offsets = [0, 128], sizes = [256, 128], strides = [1, 1]} : vector<256x384xf32> to vector<256x128xf32>
    %c0_5 = arith.constant 0 : index
    %c0_6 = arith.constant 0 : index
    %7 = vector.load %arg5[%c0_5, %c0_6] : memref<256x128xf32, #tpu.memory_space<vmem>>, vector<256x128xf32>
    tpu.vector_store %arg5[%c0_5, %c0_6], %6 {strides = array<i32>} : memref<256x128xf32, #tpu.memory_space<vmem>>, vector<256x128xf32>,
    %8 = vector.extract_strided_slice %2 {offsets = [0, 256], sizes = [256, 1], strides = [1, 1]} : vector<256x384xf32> to vector<256x1xf32>
    %c0_7 = arith.constant 0 : index
    %c0_8 = arith.constant 0 : index
    %9 = vector.load %arg6[%c0_7, %c0_8] : memref<256x1xf32, #tpu.memory_space<vmem>>, vector<256x1xf32>
    tpu.vector_store %arg6[%c0_7, %c0_8], %8 {strides = array<i32>} : memref<256x1xf32, #tpu.memory_space<vmem>>, vector<256x1xf32>,
    %c0_9 = arith.constant 0 : index
    %c0_10 = arith.constant 0 : index
    %10 = vector.load %arg3[%c0_9, %c0_10] : memref<8x96xf32, #tpu.memory_space<vmem>>, vector<8x96xf32>
    %cst_11 = arith.constant dense<0.000000e+00> : vector<8x256xf32>
    %11 = tpu.matmul %10, %0, %cst_11 {dimension_numbers = #tpu.dot_dimension_numbers<[1], [1], [0], [0], [0, 0, 1, 0], [], []>} : vector<8x96xf32>, vector<256x96xf32>, vector<8x256xf32> -> vector<8x256xf32>
    %12 = vector.extract_strided_slice %11 {offsets = [0, 0], sizes = [1, 256], strides = [1, 1]} : vector<8x256xf32> to vector<1x256xf32>
    %c0_12 = arith.constant 0 : index
    %c0_13 = arith.constant 0 : index
    %13 = vector.load %arg7[%c0_12, %c0_13] : memref<1x256xf32, #tpu.memory_space<vmem>>, vector<1x256xf32>
    tpu.vector_store %arg7[%c0_12, %c0_13], %12 {strides = array<i32>} : memref<1x256xf32, #tpu.memory_space<vmem>>, vector<1x256xf32>,
    return
  }
  func.func @transform_0(%arg0: i32) -> (i32, i32) {
    %c0_i32 = arith.constant 0 : i32
    %c0_i32_0 = arith.constant 0 : i32
    return %arg0, %c0_i32 : i32, i32
  }
  func.func @transform_1(%arg0: i32) -> (i32, i32) {
    %c0_i32 = arith.constant 0 : i32
    %c0_i32_0 = arith.constant 0 : i32
    %c0_i32_1 = arith.constant 0 : i32
    return %c0_i32, %c0_i32_0 : i32, i32
  }
  func.func @transform_2(%arg0: i32) -> (i32, i32) {
    %c0_i32 = arith.constant 0 : i32
    %c0_i32_0 = arith.constant 0 : i32
    %c0_i32_1 = arith.constant 0 : i32
    return %c0_i32, %c0_i32_0 : i32, i32
  }
  func.func @transform_3(%arg0: i32) -> (i32, i32) {
    %c0_i32 = arith.constant 0 : i32
    %c0_i32_0 = arith.constant 0 : i32
    return %arg0, %c0_i32 : i32, i32
  }
  func.func @transform_4(%arg0: i32) -> (i32, i32) {
    %c0_i32 = arith.constant 0 : i32
    %c0_i32_0 = arith.constant 0 : i32
    return %arg0, %c0_i32 : i32, i32
  }
  func.func @transform_5(%arg0: i32) -> (i32, i32) {
    %c0_i32 = arith.constant 0 : i32
    %c0_i32_0 = arith.constant 0 : i32
    return %arg0, %c0_i32 : i32, i32
  }
  func.func @transform_6(%arg0: i32) -> (i32, i32) {
    %c0_i32 = arith.constant 0 : i32
    %c0_i32_0 = arith.constant 0 : i32
    return %c0_i32, %arg0 : i32, i32
  }
}

</mosaic_0001>

<llo_original>
// kernel: tpu_custom_call.1
$region0: #{tpu_custom_call.1}
  #allocation0 [shape = 'u32[]', space=smem, size = 0x4, offset = 0x4, fixed_abs, tag = 'smem constant byte address 0x4 - core index']
  #allocation1 [shape = 'u32[144,128]{1,0:T(1,128)}', space=vmem, size = 0x12000, scoped, tag = 'internal scratch']
  %s0 = inlined_call_operand.vmem [shape: f32[768,96], index: 0, kind: input, shape index: {}]
  %s1 = inlined_call_operand.vmem [shape: f32[96,384], index: 1, kind: input, shape index: {}]
  %s2 = inlined_call_operand.vmem [shape: f32[8,96], index: 2, kind: input, shape index: {}]
  %s3 = inlined_call_operand.hbm [shape: bf16[768,128], index: 3, kind: output, shape index: {0}]
  %s4 = inlined_call_operand.hbm [shape: f32[768,128], index: 4, kind: output, shape index: {1}]
  %s5 = inlined_call_operand.vmem [shape: f32[768,1], index: 5, kind: output, shape index: {2}]
  %s6 = inlined_call_operand.hbm [shape: f32[1,768], index: 6, kind: output, shape index: {3}]
  %7 = xla_tuple %s3, %s4, %s5, %s6
  %s8 = sld [smem:[#allocation0]]
  $region69: #{tpu_custom_call.1} parent=0
    _
  %s10 = ssub.s32 1, %s8
  %s11 = scalar_select 0, %s10, %s8
  $region1: #{tpu_custom_call.1} parent=0
    #allocation2 [shape = 'u8[131072]{0}', space=vmem, size = 0x20000, scoped, tag = 'output window, operand 0']
    #allocation3 [shape = 's32[2]{0}', space=sflag, size = 0x8, scoped, tag = 'scoped memory for tpu_custom_call.1']
    #allocation4 [shape = 'u8[262144]{0}', space=vmem, size = 0x40000, scoped, tag = 'output window, operand 1']
    #allocation5 [shape = 's32[2]{0}', space=sflag, size = 0x8, scoped, tag = 'scoped memory for tpu_custom_call.1']
    #allocation6 [shape = 'u8[2048]{0}', space=vmem, size = 0x800, scoped, tag = 'output window, operand 3']
    %12 = vsyncpa [#allocation3], 0
    %s13 = scalar_lea.sflag [#allocation3], 1
    %14 = vsyncpa %s13, 0
    %15 = vsyncpa [#allocation5], 0
    %s16 = scalar_lea.sflag [#allocation5], 1
    %17 = vsyncpa %s16, 0
    loop: start=0, step=1, limit=5
    $region2: #{tpu_custom_call.1} parent=1 // loop_pre_header
      _
    $region3: #{tpu_custom_call.1} parent=1 // loop_header
      %s19 = sphi 0, %s23
      %p20 = scmp.ge.s32.totalorder %s19, 5
      %s29 = sphi 0, %s31
      %s32 = sphi 0, %s29
      %s33 = sphi 0, %s32
      %s49 = sphi 0, %s33
      %s53 = sphi 0, %s53
      %s55 = sphi 0, %s53
      %s56 = sphi 0, %s55
      %s70 = sphi 0, %s56
      %s74 = sphi 0, %s74
      %s76 = sphi 0, %s74
      %s77 = sphi 0, %s76
      %s91 = sphi 0, %s77
      %s97 = sphi 0, %s99
      %s100 = sphi 0, %s97
      %s101 = sphi 0, %s100
      %s117 = sphi 0, %s101
      %s123 = sphi 0, %s125
      %s126 = sphi 0, %s123
      %s127 = sphi 0, %s126
      %s143 = sphi 0, %s127
      %s149 = sphi 0, %s151
      %s152 = sphi 0, %s149
      %s153 = sphi 0, %s152
      %s169 = sphi 0, %s153
      %s175 = sphi 0, %s177
      %s178 = sphi 0, %s175
      %s179 = sphi 0, %s178
      %s195 = sphi 0, %s179
    $region4: #{tpu_custom_call.1} parent=1 // loop_header_branch
      %22 = sbr.rel (%p20) target = $region8
    $region5: #{tpu_custom_call.1} parent=1 // loop_body
      %s24 = ssub.s32 %s19, 1
      %s25 = ssub.s32 %s19, 2
      %s26 = sadd.s32 %s19, 1
      %s27 = ssub.s32 %s19, %s26
      %p28 = scmp.eq.s32.totalorder %s27, 0
      %s30 = sadd.s32 %s29, 1
      %s31 = scalar_select %p28, %s29, %s30
      %p34 = pneg %p28
      %p35 = scmp.eq.s32.totalorder %s19, 2
      %p36 = por %p34, %p35
      %p37 = scmp.ne.s32.totalorder %s29, %s32
      %p38 = scmp.eq.s32.totalorder %s19, 0
      %p39 = por %p37, %p38
      %p40 = scmp.ne.s32.totalorder %s29, %s32
      %p41 = scmp.eq.s32.totalorder %s24, 2
      %p42 = por %p40, %p41
      %p43 = scmp.ne.s32.totalorder %s32, %s33
      %p44 = scmp.eq.s32.totalorder %s24, 0
      %p45 = por %p43, %p44
      %p46 = scmp.ne.s32.totalorder %s32, %s33
      %p47 = scmp.eq.s32.totalorder %s25, 2
      %p48 = por %p46, %p47
      %p50 = scmp.ne.s32.totalorder %s33, %s49
      %p51 = scmp.eq.s32.totalorder %s25, 0
      %p52 = por %p50, %p51
      %s54 = sadd.s32 %s53, 1
      %p57 = scmp.eq.s32.totalorder %s19, 2
      %p58 = scmp.ne.s32.totalorder %s53, %s55
      %p59 = scmp.eq.s32.totalorder %s19, 0
      %p60 = por %p58, %p59
      %p61 = scmp.ne.s32.totalorder %s53, %s55
      %p62 = scmp.eq.s32.totalorder %s24, 2
      %p63 = por %p61, %p62
      %p64 = scmp.ne.s32.totalorder %s55, %s56
      %p65 = scmp.eq.s32.totalorder %s24, 0
      %p66 = por %p64, %p65
      %p67 = scmp.ne.s32.totalorder %s55, %s56
      %p68 = scmp.eq.s32.totalorder %s25, 2
      %p69 = por %p67, %p68
      %p71 = scmp.ne.s32.totalorder %s56, %s70
      %p72 = scmp.eq.s32.totalorder %s25, 0
      %p73 = por %p71, %p72
      %s75 = sadd.s32 %s74, 1
      %p78 = scmp.eq.s32.totalorder %s19, 2
      %p79 = scmp.ne.s32.totalorder %s74, %s76
      %p80 = scmp.eq.s32.totalorder %s19, 0
      %p81 = por %p79, %p80
      %p82 = scmp.ne.s32.totalorder %s74, %s76
      %p83 = scmp.eq.s32.totalorder %s24, 2
      %p84 = por %p82, %p83
      %p85 = scmp.ne.s32.totalorder %s76, %s77
      %p86 = scmp.eq.s32.totalorder %s24, 0
      %p87 = por %p85, %p86
      %p88 = scmp.ne.s32.totalorder %s76, %s77
      %p89 = scmp.eq.s32.totalorder %s25, 2
      %p90 = por %p88, %p89
      %p92 = scmp.ne.s32.totalorder %s77, %s91
      %p93 = scmp.eq.s32.totalorder %s25, 0
      %p94 = por %p92, %p93
      %s95 = ssub.s32 %s19, %s26
      %p96 = scmp.eq.s32.totalorder %s95, 0
      %s98 = sadd.s32 %s97, 1
      %s99 = scalar_select %p96, %s97, %s98
      %p102 = pneg %p96
      %p103 = scmp.eq.s32.totalorder %s19, 2
      %p104 = por %p102, %p103
      %p105 = scmp.ne.s32.totalorder %s97, %s100
      %p106 = scmp.eq.s32.totalorder %s19, 0
      %p107 = por %p105, %p106
      %p108 = scmp.ne.s32.totalorder %s97, %s100
      %p109 = scmp.eq.s32.totalorder %s24, 2
      %p110 = por %p108, %p109
      %p111 = scmp.ne.s32.totalorder %s100, %s101
      %p112 = scmp.eq.s32.totalorder %s24, 0
      %p113 = por %p111, %p112
      %p114 = scmp.ne.s32.totalorder %s100, %s101
      %p115 = scmp.eq.s32.totalorder %s25, 2
      %p116 = por %p114, %p115
      %p118 = scmp.ne.s32.totalorder %s101, %s117
      %p119 = scmp.eq.s32.totalorder %s25, 0
      %p120 = por %p118, %p119
      %s121 = ssub.s32 %s19, %s26
      %p122 = scmp.eq.s32.totalorder %s121, 0
      %s124 = sadd.s32 %s123, 1
      %s125 = scalar_select %p122, %s123, %s124
      %p128 = pneg %p122
      %p129 = scmp.eq.s32.totalorder %s19, 2
      %p130 = por %p128, %p129
      %p131 = scmp.ne.s32.totalorder %s123, %s126
      %p132 = scmp.eq.s32.totalorder %s19, 0
      %p133 = por %p131, %p132
      %p134 = scmp.ne.s32.totalorder %s123, %s126
      %p135 = scmp.eq.s32.totalorder %s24, 2
      %p136 = por %p134, %p135
      %p137 = scmp.ne.s32.totalorder %s126, %s127
      %p138 = scmp.eq.s32.totalorder %s24, 0
      %p139 = por %p137, %p138
      %p140 = scmp.ne.s32.totalorder %s126, %s127
      %p141 = scmp.eq.s32.totalorder %s25, 2
      %p142 = por %p140, %p141
      %p144 = scmp.ne.s32.totalorder %s127, %s143
      %p145 = scmp.eq.s32.totalorder %s25, 0
      %p146 = por %p144, %p145
      %s147 = ssub.s32 %s19, %s26
      %p148 = scmp.eq.s32.totalorder %s147, 0
      %s150 = sadd.s32 %s149, 1
      %s151 = scalar_select %p148, %s149, %s150
      %p154 = pneg %p148
      %p155 = scmp.eq.s32.totalorder %s19, 2
      %p156 = por %p154, %p155
      %p157 = scmp.ne.s32.totalorder %s149, %s152
      %p158 = scmp.eq.s32.totalorder %s19, 0
      %p159 = por %p157, %p158
      %p160 = scmp.ne.s32.totalorder %s149, %s152
      %p161 = scmp.eq.s32.totalorder %s24, 2
      %p162 = por %p160, %p161
      %p163 = scmp.ne.s32.totalorder %s152, %s153
      %p164 = scmp.eq.s32.totalorder %s24, 0
      %p165 = por %p163, %p164
      %p166 = scmp.ne.s32.totalorder %s152, %s153
      %p167 = scmp.eq.s32.totalorder %s25, 2
      %p168 = por %p166, %p167
      %p170 = scmp.ne.s32.totalorder %s153, %s169
      %p171 = scmp.eq.s32.totalorder %s25, 0
      %p172 = por %p170, %p171
      %s173 = ssub.s32 %s19, %s26
      %p174 = scmp.eq.s32.totalorder %s173, 0
      %s176 = sadd.s32 %s175, 1
      %s177 = scalar_select %p174, %s175, %s176
      %p180 = pneg %p174
      %p181 = scmp.eq.s32.totalorder %s19, 2
      %p182 = por %p180, %p181
      %p183 = scmp.ne.s32.totalorder %s175, %s178
      %p184 = scmp.eq.s32.totalorder %s19, 0
      %p185 = por %p183, %p184
      %p186 = scmp.ne.s32.totalorder %s175, %s178
      %p187 = scmp.eq.s32.totalorder %s24, 2
      %p188 = por %p186, %p187
      %p189 = scmp.ne.s32.totalorder %s178, %s179
      %p190 = scmp.eq.s32.totalorder %s24, 0
      %p191 = por %p189, %p190
      %p192 = scmp.ne.s32.totalorder %s178, %s179
      %p193 = scmp.eq.s32.totalorder %s25, 2
      %p194 = por %p192, %p193
      %p196 = scmp.ne.s32.totalorder %s179, %s195
      %p197 = scmp.eq.s32.totalorder %s25, 0
      %p198 = por %p196, %p197
      %p199 = scmp.le.s32.totalorder 1, %s19
      %p200 = scmp.lt.s32.totalorder %s19, 4
      %p201 = pnand %p199, %p200
      %p202 = pneg %p201
      // Predicated region
      $region9: #{tpu_custom_call.1} parent=5 // pred_check
        _
      $region10: #{tpu_custom_call.1} parent=5 // pred_check_branch
        %204 = sbr.rel (%p201) target = $region12
      $region11: #{tpu_custom_call.1} parent=5 // pred_region
        %s205 = ssub.s32 %s19, 1
        // Predicated region
        $region13: #{tpu_custom_call.1} parent=11 // pred_check
          %p206 = pneg %p66
        $region14: #{tpu_custom_call.1} parent=11 // pred_check_branch
          %208 = sbr.rel (%p206) target = $region16
        $region15: #{tpu_custom_call.1} parent=11 // pred_region
          _
        $region16: #{tpu_custom_call.1} parent=11 // pred_fallthru
          _
        // Predicated region
        $region17: #{tpu_custom_call.1} parent=11 // pred_check
          %p209 = pneg %p87
        $region18: #{tpu_custom_call.1} parent=11 // pred_check_branch
          %211 = sbr.rel (%p209) target = $region20
        $region19: #{tpu_custom_call.1} parent=11 // pred_region
          _
        $region20: #{tpu_custom_call.1} parent=11 // pred_fallthru
          _
      $region12: #{tpu_custom_call.1} parent=5 // pred_fallthru
        _
      %p212 = scmp.lt.s32.totalorder %s19, 3
      // Predicated region
      $region21: #{tpu_custom_call.1} parent=5 // pred_check
        %p213 = pneg %p212
      $region22: #{tpu_custom_call.1} parent=5 // pred_check_branch
        %215 = sbr.rel (%p213) target = $region24
      $region23: #{tpu_custom_call.1} parent=5 // pred_region
        // Predicated region
        $region25: #{tpu_custom_call.1} parent=23 // pred_check
          %p216 = pneg %p39
        $region26: #{tpu_custom_call.1} parent=23 // pred_check_branch
          %218 = sbr.rel (%p216) target = $region28
        $region27: #{tpu_custom_call.1} parent=23 // pred_region
          %s219 = smul.u32 32, %s19
          %p220 = scmp.lt.s32.totalorder %s219, 95
          %s221 = scalar_select %p220, %s219, 95
          %s222 = smul.addr %s221, 8
          %s223 = scalar_lea.vmem %s0, %s222
          %s224 = smul.u32 32, %s19
        $region28: #{tpu_custom_call.1} parent=23 // pred_fallthru
          _
      $region24: #{tpu_custom_call.1} parent=5 // pred_fallthru
        _
      %p225 = scmp.le.s32.totalorder 1, %s19
      %p226 = scmp.lt.s32.totalorder %s19, 4
      %p227 = pnand %p225, %p226
      %p228 = pneg %p227
      // Predicated region
      $region29: #{tpu_custom_call.1} parent=5 // pred_check
        _
      $region30: #{tpu_custom_call.1} parent=5 // pred_check_branch
        %230 = sbr.rel (%p227) target = $region32
      $region31: #{tpu_custom_call.1} parent=5 // pred_region
        %s231 = ssub.s32 %s19, 1
        %s232 = smul.u32 32, %s24
        %p233 = scmp.lt.s32.totalorder %s232, 95
        %s234 = scalar_select %p233, %s232, 95
        %s235 = smul.addr %s234, 8
        %s236 = scalar_lea.vmem %s0, %s235
        %p237 = pneg %p45
        %p238 = pneg %p42
        %p239 = pneg %p66
        %p240 = pneg %p63
        %p241 = pneg %p87
        %p242 = pneg %p84
        %p243 = pneg %p113
        %p244 = pneg %p110
        %s245 = sand.u32 %s100, 1
        %s246 = scalar_lea.sflag [#allocation3], %s245
        %s247 = sand.u32 %s100, 1
        %s248 = smul.addr %s247, 128
        %s249 = scalar_lea.vmem [#allocation2], %s248
        %p250 = pneg %p139
        %p251 = pneg %p136
        %s252 = sand.u32 %s24, 1
        %s253 = scalar_lea.sflag [#allocation5], %s252
        %s254 = sand.u32 %s126, 1
        %s255 = smul.addr %s254, 256
        %s256 = scalar_lea.vmem [#allocation4], %s255
        %p257 = pneg %p165
        %p258 = pneg %p162
        %s259 = smul.u32 32, %s24
        %p260 = scmp.lt.s32.totalorder %s259, 95
        %s261 = scalar_select %p260, %s259, 95
        %s262 = smul.addr %s261, 8
        %s263 = scalar_lea.vmem %s5, %s262
        %p264 = pneg %p191
        %p265 = pneg %p188
        %s266 = sand.u32 %s24, 1
        %s267 = scalar_lea.sflag [#allocation5], %s266
        %s268 = sand.u32 %s178, 1
        %s269 = smul.addr %s268, 2
        %s270 = scalar_lea.vmem [#allocation6], %s269
        %s271 = smul.u32 32, %s24
        %p272 = scmp.lt.s32.totalorder %s271, 95
        %s273 = scalar_select %p272, %s271, 95
        %s274 = smul.addr %s273, 8
        %s275 = scalar_lea.vmem %s0, %s274
        %s276 = smul.u32 32, %s24
        %s277 = smul.u32 32, %s24
        %s278 = smul.u32 32, %s24
        %s279 = smul.u32 32, %s24
        %p280 = scmp.lt.s32.totalorder %s279, 95
        %s281 = scalar_select %p280, %s279, 95
        %s282 = smul.addr %s281, 8
        %s283 = scalar_lea.vmem %s5, %s282
        %s284 = smul.u32 32, %s24
        %s285 = smul.u32 2, %s24
        %v286 = vld [vmem:[%s275] sm:$0xff]
        %v287 = vld [vmem:[%s275 + $0x8] sm:$0xff]
        %v288 = vld [vmem:[%s275 + $0x10] sm:$0xff]
        %v289 = vld [vmem:[%s275 + $0x18] sm:$0xff]
        %v290 = vld [vmem:[%s275 + $0x20] sm:$0xff]
        %v291 = vld [vmem:[%s275 + $0x28] sm:$0xff]
        %v292 = vld [vmem:[%s275 + $0x30] sm:$0xff]
        %v293 = vld [vmem:[%s275 + $0x38] sm:$0xff]
        %v294 = vld [vmem:[%s275 + $0x40] sm:$0xff]
        %v295 = vld [vmem:[%s275 + $0x48] sm:$0xff]
        %v296 = vld [vmem:[%s275 + $0x50] sm:$0xff]
        %v297 = vld [vmem:[%s275 + $0x58] sm:$0xff]
        %v298 = vld [vmem:[%s275 + $0x60] sm:$0xff]
        %v299 = vld [vmem:[%s275 + $0x68] sm:$0xff]
        %v300 = vld [vmem:[%s275 + $0x70] sm:$0xff]
        %v301 = vld [vmem:[%s275 + $0x78] sm:$0xff]
        %v302 = vld [vmem:[%s275 + $0x80] sm:$0xff]
        %v303 = vld [vmem:[%s275 + $0x88] sm:$0xff]
        %v304 = vld [vmem:[%s275 + $0x90] sm:$0xff]
        %v305 = vld [vmem:[%s275 + $0x98] sm:$0xff]
        %v306 = vld [vmem:[%s275 + $0xa0] sm:$0xff]
        %v307 = vld [vmem:[%s275 + $0xa8] sm:$0xff]
        %v308 = vld [vmem:[%s275 + $0xb0] sm:$0xff]
        %v309 = vld [vmem:[%s275 + $0xb8] sm:$0xff]
        %v310 = vld [vmem:[%s275 + $0xc0] sm:$0xff]
        %v311 = vld [vmem:[%s275 + $0xc8] sm:$0xff]
        %v312 = vld [vmem:[%s275 + $0xd0] sm:$0xff]
        %v313 = vld [vmem:[%s275 + $0xd8] sm:$0xff]
        %v314 = vld [vmem:[%s275 + $0xe0] sm:$0xff]
        %v315 = vld [vmem:[%s275 + $0xe8] sm:$0xff]
        %v316 = vld [vmem:[%s275 + $0xf0] sm:$0xff]
        %v317 = vld [vmem:[%s275 + $0xf8] sm:$0xff]
        %v318 = vld [vmem:[%s1] sm:$0xff]
        %v319 = vld [vmem:[%s1 + $0x8] sm:$0xff]
        %v320 = vld [vmem:[%s1 + $0x10] sm:$0xff]
        %v321 = vld [vmem:[%s1 + $0x18] sm:$0xff]
        %v322 = vld [vmem:[%s1 + $0x20] sm:$0xff]
        %v323 = vld [vmem:[%s1 + $0x28] sm:$0xff]
        %v324 = vld [vmem:[%s1 + $0x30] sm:$0xff]
        %v325 = vld [vmem:[%s1 + $0x38] sm:$0xff]
        %v326 = vld [vmem:[%s1 + $0x40] sm:$0xff]
        %v327 = vld [vmem:[%s1 + $0x48] sm:$0xff]
        %v328 = vld [vmem:[%s1 + $0x50] sm:$0xff]
        %v329 = vld [vmem:[%s1 + $0x58] sm:$0xff]
        %v330 = vld [vmem:[%s1 + $0x60] sm:$0xff]
        %v331 = vld [vmem:[%s1 + $0x68] sm:$0xff]
        %v332 = vld [vmem:[%s1 + $0x70] sm:$0xff]
        %v333 = vld [vmem:[%s1 + $0x78] sm:$0xff]
        %v334 = vld [vmem:[%s1 + $0x80] sm:$0xff]
        %v335 = vld [vmem:[%s1 + $0x88] sm:$0xff]
        %v336 = vld [vmem:[%s1 + $0x90] sm:$0xff]
        %v337 = vld [vmem:[%s1 + $0x98] sm:$0xff]
        %v338 = vld [vmem:[%s1 + $0xa0] sm:$0xff]
        %v339 = vld [vmem:[%s1 + $0xa8] sm:$0xff]
        %v340 = vld [vmem:[%s1 + $0xb0] sm:$0xff]
        %v341 = vld [vmem:[%s1 + $0xb8] sm:$0xff]
        %v342 = vld [vmem:[%s1 + $0xc0] sm:$0xff]
        %v343 = vld [vmem:[%s1 + $0xc8] sm:$0xff]
        %v344 = vld [vmem:[%s1 + $0xd0] sm:$0xff]
        %v345 = vld [vmem:[%s1 + $0xd8] sm:$0xff]
        %v346 = vld [vmem:[%s1 + $0xe0] sm:$0xff]
        %v347 = vld [vmem:[%s1 + $0xe8] sm:$0xff]
        %v348 = vld [vmem:[%s1 + $0xf0] sm:$0xff]
        %v349 = vld [vmem:[%s1 + $0xf8] sm:$0xff]
        %v350 = vld [vmem:[%s1 + $0x100] sm:$0xff]
        %v351 = vld [vmem:[%s1 + $0x108] sm:$0xff]
        %v352 = vld [vmem:[%s1 + $0x110] sm:$0xff]
        %v353 = vld [vmem:[%s1 + $0x118] sm:$0xff]
        %vm354 = vcmask 785408
        %v356 = vsel %vm354, %v286, 0
        %v359 = vsel %vm354, %v287, 0
        %v362 = vsel %vm354, %v288, 0
        %v365 = vsel %vm354, %v289, 0
        %v368 = vsel %vm354, %v290, 0
        %v371 = vsel %vm354, %v291, 0
        %v374 = vsel %vm354, %v292, 0
        %v377 = vsel %vm354, %v293, 0
        %v380 = vsel %vm354, %v294, 0
        %v383 = vsel %vm354, %v295, 0
        %v386 = vsel %vm354, %v296, 0
        %v389 = vsel %vm354, %v297, 0
        %v392 = vsel %vm354, %v298, 0
        %v395 = vsel %vm354, %v299, 0
        %v398 = vsel %vm354, %v300, 0
        %v401 = vsel %vm354, %v301, 0
        %v404 = vsel %vm354, %v302, 0
        %v407 = vsel %vm354, %v303, 0
        %v410 = vsel %vm354, %v304, 0
        %v413 = vsel %vm354, %v305, 0
        %v416 = vsel %vm354, %v306, 0
        %v419 = vsel %vm354, %v307, 0
        %v422 = vsel %vm354, %v308, 0
        %v425 = vsel %vm354, %v309, 0
        %v428 = vsel %vm354, %v310, 0
        %v431 = vsel %vm354, %v311, 0
        %v434 = vsel %vm354, %v312, 0
        %v437 = vsel %vm354, %v313, 0
        %v440 = vsel %vm354, %v314, 0
        %v443 = vsel %vm354, %v315, 0
        %v446 = vsel %vm354, %v316, 0
        %v449 = vsel %vm354, %v317, 0
        %451 = vmatprep.subr.mxu0 %v319
        %452 = vmatpush1.msra.mxu0 %v318
        %453 = vmatprep.subr.mxu0 %v322
        %454 = vmatpush1.msra.mxu0 %v321
        %455 = vmatprep.subr.mxu0 %v325
        %456 = vmatpush1.msra.mxu0 %v324
        %457 = vmatprep.subr.mxu0 %v328
        %458 = vmatpush1.msra.mxu0 %v327
        %459 = vmatprep.subr.mxu0 %v331
        %460 = vmatpush1.msra.mxu0 %v330
        %461 = vmatprep.subr.mxu0 %v334
        %462 = vmatpush1.msra.mxu0 %v333
        %463 = vmatprep.subr.mxu0 %v337
        %464 = vmatpush1.msra.mxu0 %v336
        %465 = vmatprep.subr.mxu0 %v340
        %466 = vmatpush1.msra.mxu0 %v339
        %467 = vmatprep.subr.mxu0 %v343
        %468 = vmatpush1.msra.mxu0 %v342
        %469 = vmatprep.subr.mxu0 %v346
        %470 = vmatpush1.msra.mxu0 %v345
        %471 = vmatprep.subr.mxu0 %v349
        %472 = vmatpush1.msra.mxu0 %v348
        %473 = vmatprep.subr.mxu0 %v352
        %474 = vmatpush1.msra.mxu0 %v351
        %475 = vmatprep.subr.mxu0 0.0
        %476 = vmatpush1.msra.mxu0 0.0
        %477 = vmatprep.subr.mxu0 0.0
        %478 = vmatpush1.msra.mxu0 0.0
        %479 = vmatprep.subr.mxu0 0.0
        %480 = vmatpush1.msra.mxu0 0.0
        %481 = vmatprep.subr.mxu0 0.0
        %482 = vmatpush1.msra.mxu0 0.0
        %483 = vmatprep.subr.mxu0 0.0
        %484 = vmatpush1.msra.mxu0 0.0
        %485 = vmatprep.subr.mxu0 0.0
        %486 = vmatpush1.msra.mxu0 0.0
        %487 = vmatprep.subr.mxu0 0.0
        %488 = vmatpush1.msra.mxu0 0.0
        %489 = vmatprep.subr.mxu0 0.0
        %490 = vmatpush1.msra.mxu0 0.0
        %491 = vmatprep.subr.mxu0 0.0
        %492 = vmatpush1.msra.mxu0 0.0
        %493 = vmatprep.subr.mxu0 0.0
        %494 = vmatpush1.msra.mxu0 0.0
        %495 = vmatprep.subr.mxu0 0.0
        %496 = vmatpush1.msra.mxu0 0.0
        %497 = vmatprep.subr.mxu0 0.0
        %498 = vmatpush1.msra.mxu0 0.0
        %499 = vmatprep.subr.mxu0 0.0
        %500 = vmatpush1.msra.mxu0 0.0
        %501 = vmatprep.subr.mxu0 0.0
        %502 = vmatpush1.msra.mxu0 0.0
        %503 = vmatprep.subr.mxu0 0.0
        %504 = vmatpush1.msra.mxu0 0.0
        %505 = vmatprep.subr.mxu0 0.0
        %506 = vmatpush1.msra.mxu0 0.0
        %507 = vmatprep.subr.mxu0 0.0
        %508 = vmatpush1.msra.mxu0 0.0
        %509 = vmatprep.subr.mxu0 0.0
        %510 = vmatpush1.msra.mxu0 0.0
        %511 = vmatprep.subr.mxu0 0.0
        %512 = vmatpush1.msra.mxu0 0.0
        %513 = vmatprep.subr.mxu0 0.0
        %514 = vmatpush1.msra.mxu0 0.0
        %515 = vmatprep.mubr.f32.mxu0 0.0
        %516 = vmatmul.mubr.f32.gmra.mrb[0].mxu0 %v356
        %v517 = vpop.f32.mrb[0].mxu0
        %v518 = vadd.f32 0.0, %v517
        %v519 = vpop.f32.mrb[0].mxu0
        %v520 = vadd.f32 0.0, %v519
        %521 = vmatprep.mubr.f32.mxu0 0.0
        %522 = vmatmul.mubr.f32.gmra.mrb[0].mxu0 %v359
        %v523 = vpop.f32.mrb[0].mxu0
        %v524 = vadd.f32 0.0, %v523
        %v525 = vpop.f32.mrb[0].mxu0
        %v526 = vadd.f32 0.0, %v525
        %527 = vmatprep.mubr.f32.mxu0 0.0
        %528 = vmatmul.mubr.f32.gmra.mrb[0].mxu0 %v362
        %v529 = vpop.f32.mrb[0].mxu0
        %v530 = vadd.f32 0.0, %v529
        %v531 = vpop.f32.mrb[0].mxu0
        %v532 = vadd.f32 0.0, %v531
        %533 = vmatprep.mubr.f32.mxu0 0.0
        %534 = vmatmul.mubr.f32.gmra.mrb[0].mxu0 %v365
        %v535 = vpop.f32.mrb[0].mxu0
        %v536 = vadd.f32 0.0, %v535
        %v537 = vpop.f32.mrb[0].mxu0
        %v538 = vadd.f32 0.0, %v537
        %539 = vmatprep.mubr.f32.mxu0 0.0
        %540 = vmatmul.mubr.f32.gmra.mrb[0].mxu0 %v368
        %v541 = vpop.f32.mrb[0].mxu0
        %v542 = vadd.f32 0.0, %v541
        %v543 = vpop.f32.mrb[0].mxu0
        %v544 = vadd.f32 0.0, %v543
        %545 = vmatprep.mubr.f32.mxu0 0.0
        %546 = vmatmul.mubr.f32.gmra.mrb[0].mxu0 %v371
        %v547 = vpop.f32.mrb[0].mxu0
        %v548 = vadd.f32 0.0, %v547
        %v549 = vpop.f32.mrb[0].mxu0
        %v550 = vadd.f32 0.0, %v549
        %551 = vmatprep.mubr.f32.mxu0 0.0
        %552 = vmatmul.mubr.f32.gmra.mrb[0].mxu0 %v374
        %v553 = vpop.f32.mrb[0].mxu0
        %v554 = vadd.f32 0.0, %v553
        %v555 = vpop.f32.mrb[0].mxu0
        %v556 = vadd.f32 0.0, %v555
        %557 = vmatprep.mubr.f32.mxu0 0.0
        %558 = vmatmul.mubr.f32.gmra.mrb[0].mxu0 %v377
        %v559 = vpop.f32.mrb[0].mxu0
        %v560 = vadd.f32 0.0, %v559
        %v561 = vpop.f32.mrb[0].mxu0
        %v562 = vadd.f32 0.0, %v561
        %563 = vmatprep.mubr.f32.mxu0 0.0
        %564 = vmatmul.mubr.f32.gmra.mrb[0].mxu0 %v380
        %v565 = vpop.f32.mrb[0].mxu0
        %v566 = vadd.f32 0.0, %v565
        %v567 = vpop.f32.mrb[0].mxu0
        %v568 = vadd.f32 0.0, %v567
        %569 = vmatprep.mubr.f32.mxu0 0.0
        %570 = vmatmul.mubr.f32.gmra.mrb[0].mxu0 %v383
        %v571 = vpop.f32.mrb[0].mxu0
        %v572 = vadd.f32 0.0, %v571
        %v573 = vpop.f32.mrb[0].mxu0
        %v574 = vadd.f32 0.0, %v573
        %575 = vmatprep.mubr.f32.mxu0 0.0
        %576 = vmatmul.mubr.f32.gmra.mrb[0].mxu0 %v386
        %v577 = vpop.f32.mrb[0].mxu0
        %v578 = vadd.f32 0.0, %v577
        %v579 = vpop.f32.mrb[0].mxu0
        %v580 = vadd.f32 0.0, %v579
        %581 = vmatprep.mubr.f32.mxu0 0.0
        %582 = vmatmul.mubr.f32.gmra.mrb[0].mxu0 %v389
        %v583 = vpop.f32.mrb[0].mxu0
        %v584 = vadd.f32 0.0, %v583
        %v585 = vpop.f32.mrb[0].mxu0
        %v586 = vadd.f32 0.0, %v585
        %587 = vmatprep.mubr.f32.mxu0 0.0
        %588 = vmatmul.mubr.f32.gmra.mrb[0].mxu0 %v392
        %v589 = vpop.f32.mrb[0].mxu0
        %v590 = vadd.f32 0.0, %v589
        %v591 = vpop.f32.mrb[0].mxu0
        %v592 = vadd.f32 0.0, %v591
        %593 = vmatprep.mubr.f32.mxu0 0.0
        %594 = vmatmul.mubr.f32.gmra.mrb[0].mxu0 %v395
        %v595 = vpop.f32.mrb[0].mxu0
        %v596 = vadd.f32 0.0, %v595
        %v597 = vpop.f32.mrb[0].mxu0
        %v598 = vadd.f32 0.0, %v597
        %599 = vmatprep.mubr.f32.mxu0 0.0
        %600 = vmatmul.mubr.f32.gmra.mrb[0].mxu0 %v398
        %v601 = vpop.f32.mrb[0].mxu0
        %v602 = vadd.f32 0.0, %v601
        %v603 = vpop.f32.mrb[0].mxu0
        %v604 = vadd.f32 0.0, %v603
        %605 = vmatprep.mubr.f32.mxu0 0.0
        %606 = vmatmul.mubr.f32.gmra.mrb[0].mxu0 %v401
        %v607 = vpop.f32.mrb[0].mxu0
        %v608 = vadd.f32 0.0, %v607
        %v609 = vpop.f32.mrb[0].mxu0
        %v610 = vadd.f32 0.0, %v609
        %611 = vmatprep.mubr.f32.mxu0 0.0
        %612 = vmatmul.mubr.f32.gmra.mrb[0].mxu0 %v404
        %v613 = vpop.f32.mrb[0].mxu0
        %v614 = vadd.f32 0.0, %v613
        %v615 = vpop.f32.mrb[0].mxu0
        %v616 = vadd.f32 0.0, %v615
        %617 = vmatprep.mubr.f32.mxu0 0.0
        %618 = vmatmul.mubr.f32.gmra.mrb[0].mxu0 %v407
        %v619 = vpop.f32.mrb[0].mxu0
        %v620 = vadd.f32 0.0, %v619
        %v621 = vpop.f32.mrb[0].mxu0
        %v622 = vadd.f32 0.0, %v621
        %623 = vmatprep.mubr.f32.mxu0 0.0
        %624 = vmatmul.mubr.f32.gmra.mrb[0].mxu0 %v410
        %v625 = vpop.f32.mrb[0].mxu0
        %v626 = vadd.f32 0.0, %v625
        %v627 = vpop.f32.mrb[0].mxu0
        %v628 = vadd.f32 0.0, %v627
        %629 = vmatprep.mubr.f32.mxu0 0.0
        %630 = vmatmul.mubr.f32.gmra.mrb[0].mxu0 %v413
        %v631 = vpop.f32.mrb[0].mxu0
        %v632 = vadd.f32 0.0, %v631
        %v633 = vpop.f32.mrb[0].mxu0
        %v634 = vadd.f32 0.0, %v633
        %635 = vmatprep.mubr.f32.mxu0 0.0
        %636 = vmatmul.mubr.f32.gmra.mrb[0].mxu0 %v416
        %v637 = vpop.f32.mrb[0].mxu0
        %v638 = vadd.f32 0.0, %v637
        %v639 = vpop.f32.mrb[0].mxu0
        %v640 = vadd.f32 0.0, %v639
        %641 = vmatprep.mubr.f32.mxu0 0.0
        %642 = vmatmul.mubr.f32.gmra.mrb[0].mxu0 %v419
        %v643 = vpop.f32.mrb[0].mxu0
        %v644 = vadd.f32 0.0, %v643
        %v645 = vpop.f32.mrb[0].mxu0
        %v646 = vadd.f32 0.0, %v645
        %647 = vmatprep.mubr.f32.mxu0 0.0
        %648 = vmatmul.mubr.f32.gmra.mrb[0].mxu0 %v422
        %v649 = vpop.f32.mrb[0].mxu0
        %v650 = vadd.f32 0.0, %v649
        %v651 = vpop.f32.mrb[0].mxu0
        %v652 = vadd.f32 0.0, %v651
        %653 = vmatprep.mubr.f32.mxu0 0.0
        %654 = vmatmul.mubr.f32.gmra.mrb[0].mxu0 %v425
        %v655 = vpop.f32.mrb[0].mxu0
        %v656 = vadd.f32 0.0, %v655
        %v657 = vpop.f32.mrb[0].mxu0
        %v658 = vadd.f32 0.0, %v657
        %659 = vmatprep.mubr.f32.mxu0 0.0
        %660 = vmatmul.mubr.f32.gmra.mrb[0].mxu0 %v428
        %v661 = vpop.f32.mrb[0].mxu0
        %v662 = vadd.f32 0.0, %v661
        %v663 = vpop.f32.mrb[0].mxu0
        %v664 = vadd.f32 0.0, %v663
        %665 = vmatprep.mubr.f32.mxu0 0.0
        %666 = vmatmul.mubr.f32.gmra.mrb[0].mxu0 %v431
        %v667 = vpop.f32.mrb[0].mxu0
        %v668 = vadd.f32 0.0, %v667
        %v669 = vpop.f32.mrb[0].mxu0
        %v670 = vadd.f32 0.0, %v669
        %671 = vmatprep.mubr.f32.mxu0 0.0
        %672 = vmatmul.mubr.f32.gmra.mrb[0].mxu0 %v434
        %v673 = vpop.f32.mrb[0].mxu0
        %v674 = vadd.f32 0.0, %v673
        %v675 = vpop.f32.mrb[0].mxu0
        %v676 = vadd.f32 0.0, %v675
        %677 = vmatprep.mubr.f32.mxu0 0.0
        %678 = vmatmul.mubr.f32.gmra.mrb[0].mxu0 %v437
        %v679 = vpop.f32.mrb[0].mxu0
        %v680 = vadd.f32 0.0, %v679
        %v681 = vpop.f32.mrb[0].mxu0
        %v682 = vadd.f32 0.0, %v681
        %683 = vmatprep.mubr.f32.mxu0 0.0
        %684 = vmatmul.mubr.f32.gmra.mrb[0].mxu0 %v440
        %v685 = vpop.f32.mrb[0].mxu0
        %v686 = vadd.f32 0.0, %v685
        %v687 = vpop.f32.mrb[0].mxu0
        %v688 = vadd.f32 0.0, %v687
        %689 = vmatprep.mubr.f32.mxu0 0.0
        %690 = vmatmul.mubr.f32.gmra.mrb[0].mxu0 %v443
        %v691 = vpop.f32.mrb[0].mxu0
        %v692 = vadd.f32 0.0, %v691
        %v693 = vpop.f32.mrb[0].mxu0
        %v694 = vadd.f32 0.0, %v693
        %695 = vmatprep.mubr.f32.mxu0 0.0
        %696 = vmatmul.mubr.f32.gmra.mrb[0].mxu0 %v446
        %v697 = vpop.f32.mrb[0].mxu0
        %v698 = vadd.f32 0.0, %v697
        %v699 = vpop.f32.mrb[0].mxu0
        %v700 = vadd.f32 0.0, %v699
        %701 = vmatprep.mubr.f32.mxu0 0.0
        %702 = vmatmul.mubr.f32.gmra.mrb[0].mxu0 %v449
        %v703 = vpop.f32.mrb[0].mxu0
        %v704 = vadd.f32 0.0, %v703
        %v705 = vpop.f32.mrb[0].mxu0
        %v706 = vadd.f32 0.0, %v705
        %707 = vdwg.mxu0
        %708 = vmatprep.subr.mxu0 0.0
        %709 = vmatpush1.msra.mxu0 %v320
        %710 = vmatprep.subr.mxu0 0.0
        %711 = vmatpush1.msra.mxu0 %v323
        %712 = vmatprep.subr.mxu0 0.0
        %713 = vmatpush1.msra.mxu0 %v326
        %714 = vmatprep.subr.mxu0 0.0
        %715 = vmatpush1.msra.mxu0 %v329
        %716 = vmatprep.subr.mxu0 0.0
        %717 = vmatpush1.msra.mxu0 %v332
        %718 = vmatprep.subr.mxu0 0.0
        %719 = vmatpush1.msra.mxu0 %v335
        %720 = vmatprep.subr.mxu0 0.0
        %721 = vmatpush1.msra.mxu0 %v338
        %722 = vmatprep.subr.mxu0 0.0
        %723 = vmatpush1.msra.mxu0 %v341
        %724 = vmatprep.subr.mxu0 0.0
        %725 = vmatpush1.msra.mxu0 %v344
        %726 = vmatprep.subr.mxu0 0.0
        %727 = vmatpush1.msra.mxu0 %v347
        %728 = vmatprep.subr.mxu0 0.0
        %729 = vmatpush1.msra.mxu0 %v350
        %730 = vmatprep.subr.mxu0 0.0
        %731 = vmatpush1.msra.mxu0 %v353
        %732 = vmatprep.subr.mxu0 0.0
        %733 = vmatpush1.msra.mxu0 0.0
        %734 = vmatprep.subr.mxu0 0.0
        %735 = vmatpush1.msra.mxu0 0.0
        %736 = vmatprep.subr.mxu0 0.0
        %737 = vmatpush1.msra.mxu0 0.0
        %738 = vmatprep.subr.mxu0 0.0
        %739 = vmatpush1.msra.mxu0 0.0
        %740 = vmatprep.subr.mxu0 0.0
        %741 = vmatpush1.msra.mxu0 0.0
        %742 = vmatprep.subr.mxu0 0.0
        %743 = vmatpush1.msra.mxu0 0.0
        %744 = vmatprep.subr.mxu0 0.0
        %745 = vmatpush1.msra.mxu0 0.0
        %746 = vmatprep.subr.mxu0 0.0
        %747 = vmatpush1.msra.mxu0 0.0
        %748 = vmatprep.subr.mxu0 0.0
        %749 = vmatpush1.msra.mxu0 0.0
        %750 = vmatprep.subr.mxu0 0.0
        %751 = vmatpush1.msra.mxu0 0.0
        %752 = vmatprep.subr.mxu0 0.0
        %753 = vmatpush1.msra.mxu0 0.0
        %754 = vmatprep.subr.mxu0 0.0
        %755 = vmatpush1.msra.mxu0 0.0
        %756 = vmatprep.subr.mxu0 0.0
        %757 = vmatpush1.msra.mxu0 0.0
        %758 = vmatprep.subr.mxu0 0.0
        %759 = vmatpush1.msra.mxu0 0.0
        %760 = vmatprep.subr.mxu0 0.0
        %761 = vmatpush1.msra.mxu0 0.0
        %762 = vmatprep.subr.mxu0 0.0
        %763 = vmatpush1.msra.mxu0 0.0
        %764 = vmatprep.subr.mxu0 0.0
        %765 = vmatpush1.msra.mxu0 0.0
        %766 = vmatprep.subr.mxu0 0.0
        %767 = vmatpush1.msra.mxu0 0.0
        %768 = vmatprep.subr.mxu0 0.0
        %769 = vmatpush1.msra.mxu0 0.0
        %770 = vmatprep.subr.mxu0 0.0
        %771 = vmatpush1.msra.mxu0 0.0
        %772 = vmatprep.mubr.f32.mxu0 0.0
        %773 = vmatmul.mubr.f32.gmra.mrb[0].mxu0 %v356
        %v774 = vpop.f32.mrb[0].mxu0
        %v775 = vadd.f32 0.0, %v774
        %v776 = vpop.f32.mrb[0].mxu0
        %777 = vmatprep.mubr.f32.mxu0 0.0
        %778 = vmatmul.mubr.f32.gmra.mrb[0].mxu0 %v359
        %v779 = vpop.f32.mrb[0].mxu0
        %v780 = vadd.f32 0.0, %v779
        %v781 = vpop.f32.mrb[0].mxu0
        %782 = vmatprep.mubr.f32.mxu0 0.0
        %783 = vmatmul.mubr.f32.gmra.mrb[0].mxu0 %v362
        %v784 = vpop.f32.mrb[0].mxu0
        %v785 = vadd.f32 0.0, %v784
        %v786 = vpop.f32.mrb[0].mxu0
        %787 = vmatprep.mubr.f32.mxu0 0.0
        %788 = vmatmul.mubr.f32.gmra.mrb[0].mxu0 %v365
        %v789 = vpop.f32.mrb[0].mxu0
        %v790 = vadd.f32 0.0, %v789
        %v791 = vpop.f32.mrb[0].mxu0
        %792 = vmatprep.mubr.f32.mxu0 0.0
        %793 = vmatmul.mubr.f32.gmra.mrb[0].mxu0 %v368
        %v794 = vpop.f32.mrb[0].mxu0
        %v795 = vadd.f32 0.0, %v794
        %v796 = vpop.f32.mrb[0].mxu0
        %797 = vmatprep.mubr.f32.mxu0 0.0
        %798 = vmatmul.mubr.f32.gmra.mrb[0].mxu0 %v371
        %v799 = vpop.f32.mrb[0].mxu0
        %v800 = vadd.f32 0.0, %v799
        %v801 = vpop.f32.mrb[0].mxu0
        %802 = vmatprep.mubr.f32.mxu0 0.0
        %803 = vmatmul.mubr.f32.gmra.mrb[0].mxu0 %v374
        %v804 = vpop.f32.mrb[0].mxu0
        %v805 = vadd.f32 0.0, %v804
        %v806 = vpop.f32.mrb[0].mxu0
        %807 = vmatprep.mubr.f32.mxu0 0.0
        %808 = vmatmul.mubr.f32.gmra.mrb[0].mxu0 %v377
        %v809 = vpop.f32.mrb[0].mxu0
        %v810 = vadd.f32 0.0, %v809
        %v811 = vpop.f32.mrb[0].mxu0
        %812 = vmatprep.mubr.f32.mxu0 0.0
        %813 = vmatmul.mubr.f32.gmra.mrb[0].mxu0 %v380
        %v814 = vpop.f32.mrb[0].mxu0
        %v815 = vadd.f32 0.0, %v814
        %v816 = vpop.f32.mrb[0].mxu0
        %817 = vmatprep.mubr.f32.mxu0 0.0
        %818 = vmatmul.mubr.f32.gmra.mrb[0].mxu0 %v383
        %v819 = vpop.f32.mrb[0].mxu0
        %v820 = vadd.f32 0.0, %v819
        %v821 = vpop.f32.mrb[0].mxu0
        %822 = vmatprep.mubr.f32.mxu0 0.0
        %823 = vmatmul.mubr.f32.gmra.mrb[0].mxu0 %v386
        %v824 = vpop.f32.mrb[0].mxu0
        %v825 = vadd.f32 0.0, %v824
        %v826 = vpop.f32.mrb[0].mxu0
        %827 = vmatprep.mubr.f32.mxu0 0.0
        %828 = vmatmul.mubr.f32.gmra.mrb[0].mxu0 %v389
        %v829 = vpop.f32.mrb[0].mxu0
        %v830 = vadd.f32 0.0, %v829
        %v831 = vpop.f32.mrb[0].mxu0
        %832 = vmatprep.mubr.f32.mxu0 0.0
        %833 = vmatmul.mubr.f32.gmra.mrb[0].mxu0 %v392
        %v834 = vpop.f32.mrb[0].mxu0
        %v835 = vadd.f32 0.0, %v834
        %v836 = vpop.f32.mrb[0].mxu0
        %837 = vmatprep.mubr.f32.mxu0 0.0
        %838 = vmatmul.mubr.f32.gmra.mrb[0].mxu0 %v395
        %v839 = vpop.f32.mrb[0].mxu0
        %v840 = vadd.f32 0.0, %v839
        %v841 = vpop.f32.mrb[0].mxu0
        %842 = vmatprep.mubr.f32.mxu0 0.0
        %843 = vmatmul.mubr.f32.gmra.mrb[0].mxu0 %v398
        %v844 = vpop.f32.mrb[0].mxu0
        %v845 = vadd.f32 0.0, %v844
        %v846 = vpop.f32.mrb[0].mxu0
        %847 = vmatprep.mubr.f32.mxu0 0.0
        %848 = vmatmul.mubr.f32.gmra.mrb[0].mxu0 %v401
        %v849 = vpop.f32.mrb[0].mxu0
        %v850 = vadd.f32 0.0, %v849
        %v851 = vpop.f32.mrb[0].mxu0
        %852 = vmatprep.mubr.f32.mxu0 0.0
        %853 = vmatmul.mubr.f32.gmra.mrb[0].mxu0 %v404
        %v854 = vpop.f32.mrb[0].mxu0
        %v855 = vadd.f32 0.0, %v854
        %v856 = vpop.f32.mrb[0].mxu0
        %857 = vmatprep.mubr.f32.mxu0 0.0
        %858 = vmatmul.mubr.f32.gmra.mrb[0].mxu0 %v407
        %v859 = vpop.f32.mrb[0].mxu0
        %v860 = vadd.f32 0.0, %v859
        %v861 = vpop.f32.mrb[0].mxu0
        %862 = vmatprep.mubr.f32.mxu0 0.0
        %863 = vmatmul.mubr.f32.gmra.mrb[0].mxu0 %v410
        %v864 = vpop.f32.mrb[0].mxu0
        %v865 = vadd.f32 0.0, %v864
        %v866 = vpop.f32.mrb[0].mxu0
        %867 = vmatprep.mubr.f32.mxu0 0.0
        %868 = vmatmul.mubr.f32.gmra.mrb[0].mxu0 %v413
        %v869 = vpop.f32.mrb[0].mxu0
        %v870 = vadd.f32 0.0, %v869
        %v871 = vpop.f32.mrb[0].mxu0
        %872 = vmatprep.mubr.f32.mxu0 0.0
        %873 = vmatmul.mubr.f32.gmra.mrb[0].mxu0 %v416
        %v874 = vpop.f32.mrb[0].mxu0
        %v875 = vadd.f32 0.0, %v874
        %v876 = vpop.f32.mrb[0].mxu0
        %877 = vmatprep.mubr.f32.mxu0 0.0
        %878 = vmatmul.mubr.f32.gmra.mrb[0].mxu0 %v419
        %v879 = vpop.f32.mrb[0].mxu0
        %v880 = vadd.f32 0.0, %v879
        %v881 = vpop.f32.mrb[0].mxu0
        %882 = vmatprep.mubr.f32.mxu0 0.0
        %883 = vmatmul.mubr.f32.gmra.mrb[0].mxu0 %v422
        %v884 = vpop.f32.mrb[0].mxu0
        %v885 = vadd.f32 0.0, %v884
        %v886 = vpop.f32.mrb[0].mxu0
        %887 = vmatprep.mubr.f32.mxu0 0.0
        %888 = vmatmul.mubr.f32.gmra.mrb[0].mxu0 %v425
        %v889 = vpop.f32.mrb[0].mxu0
        %v890 = vadd.f32 0.0, %v889
        %v891 = vpop.f32.mrb[0].mxu0
        %892 = vmatprep.mubr.f32.mxu0 0.0
        %893 = vmatmul.mubr.f32.gmra.mrb[0].mxu0 %v428
        %v894 = vpop.f32.mrb[0].mxu0
        %v895 = vadd.f32 0.0, %v894
        %v896 = vpop.f32.mrb[0].mxu0
        %897 = vmatprep.mubr.f32.mxu0 0.0
        %898 = vmatmul.mubr.f32.gmra.mrb[0].mxu0 %v431
        %v899 = vpop.f32.mrb[0].mxu0
        %v900 = vadd.f32 0.0, %v899
        %v901 = vpop.f32.mrb[0].mxu0
        %902 = vmatprep.mubr.f32.mxu0 0.0
        %903 = vmatmul.mubr.f32.gmra.mrb[0].mxu0 %v434
        %v904 = vpop.f32.mrb[0].mxu0
        %v905 = vadd.f32 0.0, %v904
        %v906 = vpop.f32.mrb[0].mxu0
        %907 = vmatprep.mubr.f32.mxu0 0.0
        %908 = vmatmul.mubr.f32.gmra.mrb[0].mxu0 %v437
        %v909 = vpop.f32.mrb[0].mxu0
        %v910 = vadd.f32 0.0, %v909
        %v911 = vpop.f32.mrb[0].mxu0
        %912 = vmatprep.mubr.f32.mxu0 0.0
        %913 = vmatmul.mubr.f32.gmra.mrb[0].mxu0 %v440
        %v914 = vpop.f32.mrb[0].mxu0
        %v915 = vadd.f32 0.0, %v914
        %v916 = vpop.f32.mrb[0].mxu0
        %917 = vmatprep.mubr.f32.mxu0 0.0
        %918 = vmatmul.mubr.f32.gmra.mrb[0].mxu0 %v443
        %v919 = vpop.f32.mrb[0].mxu0
        %v920 = vadd.f32 0.0, %v919
        %v921 = vpop.f32.mrb[0].mxu0
        %922 = vmatprep.mubr.f32.mxu0 0.0
        %923 = vmatmul.mubr.f32.gmra.mrb[0].mxu0 %v446
        %v924 = vpop.f32.mrb[0].mxu0
        %v925 = vadd.f32 0.0, %v924
        %v926 = vpop.f32.mrb[0].mxu0
        %927 = vmatprep.mubr.f32.mxu0 0.0
        %928 = vmatmul.mubr.f32.gmra.mrb[0].mxu0 %v449
        %v929 = vpop.f32.mrb[0].mxu0
        %v930 = vadd.f32 0.0, %v929
        %v931 = vpop.f32.mrb[0].mxu0
        %932 = vdwg.mxu0
        %v933 = vpack.c.bf16 %v524, %v518
        %v934 = vpack.c.bf16 %v536, %v530
        %v935 = vpack.c.bf16 %v548, %v542
        %v936 = vpack.c.bf16 %v560, %v554
        %v937 = vpack.c.bf16 %v572, %v566
        %v938 = vpack.c.bf16 %v584, %v578
        %v939 = vpack.c.bf16 %v596, %v590
        %v940 = vpack.c.bf16 %v608, %v602
        %v941 = vpack.c.bf16 %v620, %v614
        %v942 = vpack.c.bf16 %v632, %v626
        %v943 = vpack.c.bf16 %v644, %v638
        %v944 = vpack.c.bf16 %v656, %v650
        %v945 = vpack.c.bf16 %v668, %v662
        %v946 = vpack.c.bf16 %v680, %v674
        %v947 = vpack.c.bf16 %v692, %v686
        %v948 = vpack.c.bf16 %v704, %v698
        %v965 = vunpack.c.l.b16 %v933
        %v966 = vunpack.c.h.b16 %v933
        %v967 = vunpack.c.l.b16 %v934
        %v968 = vunpack.c.h.b16 %v934
        %v969 = vunpack.c.l.b16 %v935
        %v970 = vunpack.c.h.b16 %v935
        %v971 = vunpack.c.l.b16 %v936
        %v972 = vunpack.c.h.b16 %v936
        %v973 = vunpack.c.l.b16 %v937
        %v974 = vunpack.c.h.b16 %v937
        %v975 = vunpack.c.l.b16 %v938
        %v976 = vunpack.c.h.b16 %v938
        %v977 = vunpack.c.l.b16 %v939
        %v978 = vunpack.c.h.b16 %v939
        %v979 = vunpack.c.l.b16 %v940
        %v980 = vunpack.c.h.b16 %v940
        %v981 = vunpack.c.l.b16 %v941
        %v982 = vunpack.c.h.b16 %v941
        %v983 = vunpack.c.l.b16 %v942
        %v984 = vunpack.c.h.b16 %v942
        %v985 = vunpack.c.l.b16 %v943
        %v986 = vunpack.c.h.b16 %v943
        %v987 = vunpack.c.l.b16 %v944
        %v988 = vunpack.c.h.b16 %v944
        %v989 = vunpack.c.l.b16 %v945
        %v990 = vunpack.c.h.b16 %v945
        %v991 = vunpack.c.l.b16 %v946
        %v992 = vunpack.c.h.b16 %v946
        %v993 = vunpack.c.l.b16 %v947
        %v994 = vunpack.c.h.b16 %v947
        %v995 = vunpack.c.l.b16 %v948
        %v996 = vunpack.c.h.b16 %v948
        %v997 = vpack.c.b16 %v965, %v965
        %v998 = vpack.c.b16 %v966, %v966
        %v999 = vpack.c.b16 %v967, %v967
        %v1000 = vpack.c.b16 %v968, %v968
        %v1001 = vpack.c.b16 %v969, %v969
        %v1002 = vpack.c.b16 %v970, %v970
        %v1003 = vpack.c.b16 %v971, %v971
        %v1004 = vpack.c.b16 %v972, %v972
        %v1005 = vpack.c.b16 %v973, %v973
        %v1006 = vpack.c.b16 %v974, %v974
        %v1007 = vpack.c.b16 %v975, %v975
        %v1008 = vpack.c.b16 %v976, %v976
        %v1009 = vpack.c.b16 %v977, %v977
        %v1010 = vpack.c.b16 %v978, %v978
        %v1011 = vpack.c.b16 %v979, %v979
        %v1012 = vpack.c.b16 %v980, %v980
        %v1013 = vpack.c.b16 %v981, %v981
        %v1014 = vpack.c.b16 %v982, %v982
        %v1015 = vpack.c.b16 %v983, %v983
        %v1016 = vpack.c.b16 %v984, %v984
        %v1017 = vpack.c.b16 %v985, %v985
        %v1018 = vpack.c.b16 %v986, %v986
        %v1019 = vpack.c.b16 %v987, %v987
        %v1020 = vpack.c.b16 %v988, %v988
        %v1021 = vpack.c.b16 %v989, %v989
        %v1022 = vpack.c.b16 %v990, %v990
        %v1023 = vpack.c.b16 %v991, %v991
        %v1024 = vpack.c.b16 %v992, %v992
        %v1025 = vpack.c.b16 %v993, %v993
        %v1026 = vpack.c.b16 %v994, %v994
        %v1027 = vpack.c.b16 %v995, %v995
        %v1028 = vpack.c.b16 %v996, %v996
        %1061 = vst [vmem:[%s249] sm:$0xf] %v997
        %1062 = vst [vmem:[%s249 + $0x4] sm:$0xf] %v998
        %1063 = vst [vmem:[%s249 + $0x8] sm:$0xf] %v999
        %1064 = vst [vmem:[%s249 + $0xc] sm:$0xf] %v1000
        %1065 = vst [vmem:[%s249 + $0x10] sm:$0xf] %v1001
        %1066 = vst [vmem:[%s249 + $0x14] sm:$0xf] %v1002
        %1067 = vst [vmem:[%s249 + $0x18] sm:$0xf] %v1003
        %1068 = vst [vmem:[%s249 + $0x1c] sm:$0xf] %v1004
        %1069 = vst [vmem:[%s249 + $0x20] sm:$0xf] %v1005
        %1070 = vst [vmem:[%s249 + $0x24] sm:$0xf] %v1006
        %1071 = vst [vmem:[%s249 + $0x28] sm:$0xf] %v1007
        %1072 = vst [vmem:[%s249 + $0x2c] sm:$0xf] %v1008
        %1073 = vst [vmem:[%s249 + $0x30] sm:$0xf] %v1009
        %1074 = vst [vmem:[%s249 + $0x34] sm:$0xf] %v1010
        %1075 = vst [vmem:[%s249 + $0x38] sm:$0xf] %v1011
        %1076 = vst [vmem:[%s249 + $0x3c] sm:$0xf] %v1012
        %1077 = vst [vmem:[%s249 + $0x40] sm:$0xf] %v1013
        %1078 = vst [vmem:[%s249 + $0x44] sm:$0xf] %v1014
        %1079 = vst [vmem:[%s249 + $0x48] sm:$0xf] %v1015
        %1080 = vst [vmem:[%s249 + $0x4c] sm:$0xf] %v1016
        %1081 = vst [vmem:[%s249 + $0x50] sm:$0xf] %v1017
        %1082 = vst [vmem:[%s249 + $0x54] sm:$0xf] %v1018
        %1083 = vst [vmem:[%s249 + $0x58] sm:$0xf] %v1019
        %1084 = vst [vmem:[%s249 + $0x5c] sm:$0xf] %v1020
        %1085 = vst [vmem:[%s249 + $0x60] sm:$0xf] %v1021
        %1086 = vst [vmem:[%s249 + $0x64] sm:$0xf] %v1022
        %1087 = vst [vmem:[%s249 + $0x68] sm:$0xf] %v1023
        %1088 = vst [vmem:[%s249 + $0x6c] sm:$0xf] %v1024
        %1089 = vst [vmem:[%s249 + $0x70] sm:$0xf] %v1025
        %1090 = vst [vmem:[%s249 + $0x74] sm:$0xf] %v1026
        %1091 = vst [vmem:[%s249 + $0x78] sm:$0xf] %v1027
        %1092 = vst [vmem:[%s249 + $0x7c] sm:$0xf] %v1028
        %1093 = vst [vmem:[%s256] sm:$0xff] %v520
        %1094 = vst [vmem:[%s256 + $0x8] sm:$0xff] %v526
        %1095 = vst [vmem:[%s256 + $0x10] sm:$0xff] %v532
        %1096 = vst [vmem:[%s256 + $0x18] sm:$0xff] %v538
        %1097 = vst [vmem:[%s256 + $0x20] sm:$0xff] %v544
        %1098 = vst [vmem:[%s256 + $0x28] sm:$0xff] %v550
        %1099 = vst [vmem:[%s256 + $0x30] sm:$0xff] %v556
        %1100 = vst [vmem:[%s256 + $0x38] sm:$0xff] %v562
        %1101 = vst [vmem:[%s256 + $0x40] sm:$0xff] %v568
        %1102 = vst [vmem:[%s256 + $0x48] sm:$0xff] %v574
        %1103 = vst [vmem:[%s256 + $0x50] sm:$0xff] %v580
        %1104 = vst [vmem:[%s256 + $0x58] sm:$0xff] %v586
        %1105 = vst [vmem:[%s256 + $0x60] sm:$0xff] %v592
        %1106 = vst [vmem:[%s256 + $0x68] sm:$0xff] %v598
        %1107 = vst [vmem:[%s256 + $0x70] sm:$0xff] %v604
        %1108 = vst [vmem:[%s256 + $0x78] sm:$0xff] %v610
        %1109 = vst [vmem:[%s256 + $0x80] sm:$0xff] %v616
        %1110 = vst [vmem:[%s256 + $0x88] sm:$0xff] %v622
        %1111 = vst [vmem:[%s256 + $0x90] sm:$0xff] %v628
        %1112 = vst [vmem:[%s256 + $0x98] sm:$0xff] %v634
        %1113 = vst [vmem:[%s256 + $0xa0] sm:$0xff] %v640
        %1114 = vst [vmem:[%s256 + $0xa8] sm:$0xff] %v646
        %1115 = vst [vmem:[%s256 + $0xb0] sm:$0xff] %v652
        %1116 = vst [vmem:[%s256 + $0xb8] sm:$0xff] %v658
        %1117 = vst [vmem:[%s256 + $0xc0] sm:$0xff] %v664
        %1118 = vst [vmem:[%s256 + $0xc8] sm:$0xff] %v670
        %1119 = vst [vmem:[%s256 + $0xd0] sm:$0xff] %v676
        %1120 = vst [vmem:[%s256 + $0xd8] sm:$0xff] %v682
        %1121 = vst [vmem:[%s256 + $0xe0] sm:$0xff] %v688
        %1122 = vst [vmem:[%s256 + $0xe8] sm:$0xff] %v694
        %1123 = vst [vmem:[%s256 + $0xf0] sm:$0xff] %v700
        %1124 = vst [vmem:[%s256 + $0xf8] sm:$0xff] %v706
        %vm1125 = vcmask 7168
        %1126 = vst.msk [vmem:[%s283] sm:$0xff] %vm1125, %v775
        %1127 = vst.msk [vmem:[%s283 + $0x8] sm:$0xff] %vm1125, %v780
        %1128 = vst.msk [vmem:[%s283 + $0x10] sm:$0xff] %vm1125, %v785
        %1129 = vst.msk [vmem:[%s283 + $0x18] sm:$0xff] %vm1125, %v790
        %1130 = vst.msk [vmem:[%s283 + $0x20] sm:$0xff] %vm1125, %v795
        %1131 = vst.msk [vmem:[%s283 + $0x28] sm:$0xff] %vm1125, %v800
        %1132 = vst.msk [vmem:[%s283 + $0x30] sm:$0xff] %vm1125, %v805
        %1133 = vst.msk [vmem:[%s283 + $0x38] sm:$0xff] %vm1125, %v810
        %1134 = vst.msk [vmem:[%s283 + $0x40] sm:$0xff] %vm1125, %v815
        %1135 = vst.msk [vmem:[%s283 + $0x48] sm:$0xff] %vm1125, %v820
        %1136 = vst.msk [vmem:[%s283 + $0x50] sm:$0xff] %vm1125, %v825
        %1137 = vst.msk [vmem:[%s283 + $0x58] sm:$0xff] %vm1125, %v830
        %1138 = vst.msk [vmem:[%s283 + $0x60] sm:$0xff] %vm1125, %v835
        %1139 = vst.msk [vmem:[%s283 + $0x68] sm:$0xff] %vm1125, %v840
        %1140 = vst.msk [vmem:[%s283 + $0x70] sm:$0xff] %vm1125, %v845
        %1141 = vst.msk [vmem:[%s283 + $0x78] sm:$0xff] %vm1125, %v850
        %1142 = vst.msk [vmem:[%s283 + $0x80] sm:$0xff] %vm1125, %v855
        %1143 = vst.msk [vmem:[%s283 + $0x88] sm:$0xff] %vm1125, %v860
        %1144 = vst.msk [vmem:[%s283 + $0x90] sm:$0xff] %vm1125, %v865
        %1145 = vst.msk [vmem:[%s283 + $0x98] sm:$0xff] %vm1125, %v870
        %1146 = vst.msk [vmem:[%s283 + $0xa0] sm:$0xff] %vm1125, %v875
        %1147 = vst.msk [vmem:[%s283 + $0xa8] sm:$0xff] %vm1125, %v880
        %1148 = vst.msk [vmem:[%s283 + $0xb0] sm:$0xff] %vm1125, %v885
        %1149 = vst.msk [vmem:[%s283 + $0xb8] sm:$0xff] %vm1125, %v890
        %1150 = vst.msk [vmem:[%s283 + $0xc0] sm:$0xff] %vm1125, %v895
        %1151 = vst.msk [vmem:[%s283 + $0xc8] sm:$0xff] %vm1125, %v900
        %1152 = vst.msk [vmem:[%s283 + $0xd0] sm:$0xff] %vm1125, %v905
        %1153 = vst.msk [vmem:[%s283 + $0xd8] sm:$0xff] %vm1125, %v910
        %1154 = vst.msk [vmem:[%s283 + $0xe0] sm:$0xff] %vm1125, %v915
        %1155 = vst.msk [vmem:[%s283 + $0xe8] sm:$0xff] %vm1125, %v920
        %1156 = vst.msk [vmem:[%s283 + $0xf0] sm:$0xff] %vm1125, %v925
        %1157 = vst.msk [vmem:[%s283 + $0xf8] sm:$0xff] %vm1125, %v930
        %v1158 = vld [vmem:[%s2] sm:$0xff]
        %v1160 = vsel %vm354, %v1158, 0
        %1162 = vmatprep.subr.mxu0 0.0
        %1163 = vmatpush1.xpose.msra.mxu0 %v356
        %1164 = vmatprep.subr.mxu0 0.0
        %1165 = vmatpush1.xpose.msra.mxu0 %v359
        %1166 = vmatprep.subr.mxu0 0.0
        %1167 = vmatpush1.xpose.msra.mxu0 %v362
        %1168 = vmatprep.subr.mxu0 0.0
        %1169 = vmatpush1.xpose.msra.mxu0 %v365
        %1170 = vmatprep.subr.mxu0 0.0
        %1171 = vmatpush1.xpose.msra.mxu0 %v368
        %1172 = vmatprep.subr.mxu0 0.0
        %1173 = vmatpush1.xpose.msra.mxu0 %v371
        %1174 = vmatprep.subr.mxu0 0.0
        %1175 = vmatpush1.xpose.msra.mxu0 %v374
        %1176 = vmatprep.subr.mxu0 0.0
        %1177 = vmatpush1.xpose.msra.mxu0 %v377
        %1178 = vmatprep.subr.mxu0 0.0
        %1179 = vmatpush1.xpose.msra.mxu0 %v380
        %1180 = vmatprep.subr.mxu0 0.0
        %1181 = vmatpush1.xpose.msra.mxu0 %v383
        %1182 = vmatprep.subr.mxu0 0.0
        %1183 = vmatpush1.xpose.msra.mxu0 %v386
        %1184 = vmatprep.subr.mxu0 0.0
        %1185 = vmatpush1.xpose.msra.mxu0 %v389
        %1186 = vmatprep.subr.mxu0 0.0
        %1187 = vmatpush1.xpose.msra.mxu0 %v392
        %1188 = vmatprep.subr.mxu0 0.0
        %1189 = vmatpush1.xpose.msra.mxu0 %v395
        %1190 = vmatprep.subr.mxu0 0.0
        %1191 = vmatpush1.xpose.msra.mxu0 %v398
        %1192 = vmatprep.subr.mxu0 0.0
        %1193 = vmatpush1.xpose.msra.mxu0 %v401
        %1194 = vmatprep.subr.mxu0 0.0
        %1195 = vmatpush1.xpose.msra.mxu0 %v404
        %1196 = vmatprep.subr.mxu0 0.0
        %1197 = vmatpush1.xpose.msra.mxu0 %v407
        %1198 = vmatprep.subr.mxu0 0.0
        %1199 = vmatpush1.xpose.msra.mxu0 %v410
        %1200 = vmatprep.subr.mxu0 0.0
        %1201 = vmatpush1.xpose.msra.mxu0 %v413
        %1202 = vmatprep.subr.mxu0 0.0
        %1203 = vmatpush1.xpose.msra.mxu0 %v416
        %1204 = vmatprep.subr.mxu0 0.0
        %1205 = vmatpush1.xpose.msra.mxu0 %v419
        %1206 = vmatprep.subr.mxu0 0.0
        %1207 = vmatpush1.xpose.msra.mxu0 %v422
        %1208 = vmatprep.subr.mxu0 0.0
        %1209 = vmatpush1.xpose.msra.mxu0 %v425
        %1210 = vmatprep.subr.mxu0 0.0
        %1211 = vmatpush1.xpose.msra.mxu0 %v428
        %1212 = vmatprep.subr.mxu0 0.0
        %1213 = vmatpush1.xpose.msra.mxu0 %v431
        %1214 = vmatprep.subr.mxu0 0.0
        %1215 = vmatpush1.xpose.msra.mxu0 %v434
        %1216 = vmatprep.subr.mxu0 0.0
        %1217 = vmatpush1.xpose.msra.mxu0 %v437
        %1218 = vmatprep.subr.mxu0 0.0
        %1219 = vmatpush1.xpose.msra.mxu0 %v440
        %1220 = vmatprep.subr.mxu0 0.0
        %1221 = vmatpush1.xpose.msra.mxu0 %v443
        %1222 = vmatprep.subr.mxu0 0.0
        %1223 = vmatpush1.xpose.msra.mxu0 %v446
        %1224 = vmatprep.subr.mxu0 0.0
        %1225 = vmatpush1.xpose.msra.mxu0 %v449
        %1226 = vmatprep.mubr.f32.mxu0 0.0
        %1227 = vmatmul.mubr.f32.gmra.mrb[0].mxu0 %v1160
        %v1228 = vpop.f32.mrb[0].mxu0
        %v1229 = vadd.f32 0.0, %v1228
        %v1230 = vpop.f32.mrb[0].mxu0
        %v1231 = vadd.f32 0.0, %v1230
        %1232 = vdwg.mxu0
        %v1235 = vcombine.low %v1229, %v1231
        %v1237 = vunpack.c.l.s4 1966171168
        %v1238 = vunpack.c.0.s8 %v1237
        %v1239 = vlaneseq
        %v1240 = vshrl.u32 %v1239, 7
        %v1241 = vsub.s32 %v1238, %v1240
        %v1242 = vrot.slane %v1235, %v1241
        %v1244 = vunpack.c.l.s4 1966171168
        %v1245 = vunpack.c.0.s8 %v1244
        %v1246 = vlaneseq
        %v1247 = vshrl.u32 %v1246, 7
        %v1248 = vsub.s32 %v1245, %v1247
        %v1249 = vrot.slane %v1242, %v1248
        %v1251 = vlaneseq
        %vm1252 = vcmp.ge.s32.totalorder %v1251, 0
        %vm1253 = vcmp.lt.s32.totalorder %v1251, 256
        %vm1254 = vmand %vm1252, %vm1253
        %1255 = vst.msk [vmem:[%s270] sm:$0x3] %vm1254, %v1249
        %s1256 = sand.u32 %s100, 1
        %s1257 = scalar_lea.sflag [#allocation3], %s1256
        %s1258 = sand.u32 %s100, 1
        %s1259 = smul.addr %s1258, 128
        %s1260 = scalar_lea.vmem [#allocation2], %s1259
        %s1261 = sand.u32 %s24, 1
        %s1262 = scalar_lea.sflag [#allocation5], %s1261
        %s1263 = sand.u32 %s126, 1
        %s1264 = smul.addr %s1263, 256
        %s1265 = scalar_lea.vmem [#allocation4], %s1264
        %s1266 = smul.u32 32, %s24
        %p1267 = scmp.lt.s32.totalorder %s1266, 95
        %s1268 = scalar_select %p1267, %s1266, 95
        %s1269 = smul.addr %s1268, 8
        %s1270 = scalar_lea.vmem %s5, %s1269
        %s1271 = sand.u32 %s24, 1
        %s1272 = scalar_lea.sflag [#allocation5], %s1271
        %s1273 = sand.u32 %s178, 1
        %s1274 = smul.addr %s1273, 2
        %s1275 = scalar_lea.vmem [#allocation6], %s1274
        // Predicated region
        $region33: #{tpu_custom_call.1} parent=31 // pred_check
          %p1276 = pneg %p110
        $region34: #{tpu_custom_call.1} parent=31 // pred_check_branch
          %1278 = sbr.rel (%p1276) target = $region36
        $region35: #{tpu_custom_call.1} parent=31 // pred_region
          %s1279 = smul.u32 32, %s24
          %s1281 = ssub.s32 2048, 2048
          %1282 = vsyncadd %s1257, %s1281
          %s1283 = smul.addr %s1279, 64
          %s1284 = scalar_lea.hbm %s3, %s1283
          %s1285 = sshll.u32 %s1260, 4
          %s1286 = int_to_ptr.vmem [resolvable:$true] %s1285
          %1291 = dma.vmem_to_hbm [thread:$0]  %s1286, 2048, %s1284, %s1257, 64, 64, 4
        $region36: #{tpu_custom_call.1} parent=31 // pred_fallthru
          _
        // Predicated region
        $region37: #{tpu_custom_call.1} parent=31 // pred_check
          %p1292 = pneg %p136
        $region38: #{tpu_custom_call.1} parent=31 // pred_check_branch
          %1294 = sbr.rel (%p1292) target = $region40
        $region39: #{tpu_custom_call.1} parent=31 // pred_region
          %s1295 = smul.u32 32, %s24
          %s1297 = ssub.s32 4096, 4096
          %1298 = vsyncadd %s1262, %s1297
          %s1299 = smul.addr %s1295, 128
          %s1300 = scalar_lea.hbm %s4, %s1299
          %s1301 = sshll.u32 %s1265, 4
          %s1302 = int_to_ptr.vmem [resolvable:$true] %s1301
          %1307 = dma.vmem_to_hbm [thread:$0]  %s1302, 4096, %s1300, %s1262, 128, 128, 8
        $region40: #{tpu_custom_call.1} parent=31 // pred_fallthru
          _
        // Predicated region
        $region41: #{tpu_custom_call.1} parent=31 // pred_check
          %p1308 = pneg %p162
        $region42: #{tpu_custom_call.1} parent=31 // pred_check_branch
          %1310 = sbr.rel (%p1308) target = $region44
        $region43: #{tpu_custom_call.1} parent=31 // pred_region
          %s1311 = smul.u32 32, %s24
        $region44: #{tpu_custom_call.1} parent=31 // pred_fallthru
          _
        // Predicated region
        $region45: #{tpu_custom_call.1} parent=31 // pred_check
          %p1312 = pneg %p188
        $region46: #{tpu_custom_call.1} parent=31 // pred_check_branch
          %1314 = sbr.rel (%p1312) target = $region48
        $region47: #{tpu_custom_call.1} parent=31 // pred_region
          %s1315 = smul.u32 2, %s24
          %s1317 = ssub.s32 32, 32
          %1318 = vsyncadd %s1272, %s1317
          %s1319 = smul.addr %s1315, 16
          %s1320 = scalar_lea.hbm %s6, %s1319
          %s1322 = sshll.u32 %s1275, 4
          %s1323 = int_to_ptr.vmem [resolvable:$true] %s1322
          %1325 = dma.vmem_to_hbm [thread:$0]  %s1323, 32, %s1320, %s1272
        $region48: #{tpu_custom_call.1} parent=31 // pred_fallthru
          _
      $region32: #{tpu_custom_call.1} parent=5 // pred_fallthru
        _
      %p1326 = scmp.le.s32.totalorder 2, %s19
      // Predicated region
      $region49: #{tpu_custom_call.1} parent=5 // pred_check
        %p1327 = pneg %p1326
      $region50: #{tpu_custom_call.1} parent=5 // pred_check_branch
        %1329 = sbr.rel (%p1327) target = $region52
      $region51: #{tpu_custom_call.1} parent=5 // pred_region
        %s1330 = ssub.s32 %s19, 2
        // Predicated region
        $region53: #{tpu_custom_call.1} parent=51 // pred_check
          %p1331 = pneg %p116
        $region54: #{tpu_custom_call.1} parent=51 // pred_check_branch
          %1333 = sbr.rel (%p1331) target = $region56
        $region55: #{tpu_custom_call.1} parent=51 // pred_region
          %s1334 = sand.u32 %s101, 1
          %s1335 = scalar_lea.sflag [#allocation3], %s1334
          %s1336 = sand.u32 %s101, 1
          %s1337 = smul.addr %s1336, 128
          %s1338 = scalar_lea.vmem [#allocation2], %s1337
          %1339 = dma.done %s1335, 2048
        $region56: #{tpu_custom_call.1} parent=51 // pred_fallthru
          _
        // Predicated region
        $region57: #{tpu_custom_call.1} parent=51 // pred_check
          %p1340 = pneg %p142
        $region58: #{tpu_custom_call.1} parent=51 // pred_check_branch
          %1342 = sbr.rel (%p1340) target = $region60
        $region59: #{tpu_custom_call.1} parent=51 // pred_region
          %s1343 = sand.u32 %s25, 1
          %s1344 = scalar_lea.sflag [#allocation5], %s1343
          %s1345 = sand.u32 %s127, 1
          %s1346 = smul.addr %s1345, 256
          %s1347 = scalar_lea.vmem [#allocation4], %s1346
          %1348 = dma.done %s1344, 4096
        $region60: #{tpu_custom_call.1} parent=51 // pred_fallthru
          _
        // Predicated region
        $region61: #{tpu_custom_call.1} parent=51 // pred_check
          %p1349 = pneg %p168
        $region62: #{tpu_custom_call.1} parent=51 // pred_check_branch
          %1351 = sbr.rel (%p1349) target = $region64
        $region63: #{tpu_custom_call.1} parent=51 // pred_region
          %s1352 = smul.u32 32, %s25
          %p1353 = scmp.lt.s32.totalorder %s1352, 95
          %s1354 = scalar_select %p1353, %s1352, 95
          %s1355 = smul.addr %s1354, 8
          %s1356 = scalar_lea.vmem %s5, %s1355
        $region64: #{tpu_custom_call.1} parent=51 // pred_fallthru
          _
        // Predicated region
        $region65: #{tpu_custom_call.1} parent=51 // pred_check
          %p1357 = pneg %p194
        $region66: #{tpu_custom_call.1} parent=51 // pred_check_branch
          %1359 = sbr.rel (%p1357) target = $region68
        $region67: #{tpu_custom_call.1} parent=51 // pred_region
          %s1360 = sand.u32 %s25, 1
          %s1361 = scalar_lea.sflag [#allocation5], %s1360
          %s1362 = sand.u32 %s179, 1
          %s1363 = smul.addr %s1362, 2
          %s1364 = scalar_lea.vmem [#allocation6], %s1363
          %1365 = dma.done %s1361, 32
        $region68: #{tpu_custom_call.1} parent=51 // pred_fallthru
          _
      $region52: #{tpu_custom_call.1} parent=5 // pred_fallthru
        _
    $region6: #{tpu_custom_call.1} parent=1 // loop_footer
      %s23 = sadd.s32 1, %s19
    $region7: #{tpu_custom_call.1} parent=1 // loop_footer_branch
      %18 = sbr.rel target = $region3
    $region8: #{tpu_custom_call.1} parent=1 // loop_exit
      _
    %1366 = vsyncpa [#allocation3], 1
    %s1367 = scalar_lea.sflag [#allocation3], 1
    %1368 = vsyncpa %s1367, 1
    %1369 = vsyncpa [#allocation5], 1
    %s1370 = scalar_lea.sflag [#allocation5], 1
    %1371 = vsyncpa %s1370, 1

</llo_original>
